<compile_context>
chip_gen: v7x
topology: tpu7x:2x2x1
jax: 0.10.0
libtpu: 0.0.40
codegen_flags: <defaults>
</compile_context>

<pallas_src>
import numpy as np
import jax
import jax.numpy as jnp
from jax import lax
from jax.experimental import pallas as pl
from jax.experimental.pallas import tpu as pltpu


# ----------------------------- Pallas kernel ------------------------------ #
def critic_kernel(idx_ref, step_ref, emb_wih_ref, whh_hbm_ref, b_ref,
                  wc_ref, bc_ref, out_ref, xg_ref, whh_vmem_ref, whh_sem):
    T, Bp, G = xg_ref.shape            # time steps, padded batch, 4*Hp
    Hp = G // 4
    A1p = emb_wih_ref.shape[0]
    TB = T * Bp

    # Kick off the largest weight DMA immediately; it overlaps the fused
    # embedding + input-projection matmul below (manual double-buffer-style
    # copy, since the gridless call would otherwise serialize it up front).
    whh_cp = pltpu.make_async_copy(whh_hbm_ref, whh_vmem_ref, whh_sem)
    whh_cp.start()

    # Embedding gather fused with the input projection: emb @ W_ih was folded
    # into a single (A1p, 4*Hp) table at prep time, so the one-hot row select
    # directly produces the gate pre-activations (minus the recurrent term).
    idx = idx_ref[...]                                               # (TB, 1) int32
    onehot = (idx == lax.broadcasted_iota(jnp.int32, (TB, A1p), 1)
              ).astype(jnp.float32)                                  # (TB, A1p)
    xg = (jnp.dot(onehot, emb_wih_ref[...],
                  preferred_element_type=jnp.float32)
          + b_ref[...])                                              # (TB, 4*Hp)
    for t in range(T):                                               # stage per-step
        xg_ref[t] = xg[t * Bp:(t + 1) * Bp, :]                       # aligned (Bp,4Hp)

    whh_cp.wait()                                                    # W_hh now in VMEM
    whh = whh_vmem_ref[...]                                          # (Hp, 4*Hp)
    step1 = step_ref[...] + 1                                        # (Bp, 1)

    h = jnp.zeros((Bp, Hp), jnp.float32)
    c = jnp.zeros((Bp, Hp), jnp.float32)
    feat = jnp.zeros((Bp, Hp), jnp.float32)
    # NOTE: if cur_step + 1 ever fell outside [0, T-1] this select would leave
    # feat at zero (output = bias); the reference would index-error instead.
    # Current usage (cur_step in [0, L]) is always in range.

    # Fully unrolled recurrence: T is small and static, so only h @ W_hh sits
    # on the serial dependency chain; each gate slice is a full 128-lane block
    # and each xg_ref[t] load is a full tile-aligned (8, 4*Hp) block.
    for t in range(T):
        g = xg_ref[t] + jnp.dot(h, whh, preferred_element_type=jnp.float32)
        i_g = jax.nn.sigmoid(g[:, 0 * Hp:1 * Hp])
        f_g = jax.nn.sigmoid(g[:, 1 * Hp:2 * Hp])
        g_g = jnp.tanh(g[:, 2 * Hp:3 * Hp])
        o_g = jax.nn.sigmoid(g[:, 3 * Hp:4 * Hp])
        c = f_g * c + i_g * g_g
        h = o_g * jnp.tanh(c)
        # keep the hidden state at t == cur_step + 1  (== hs[cur_step + 1])
        feat = jnp.where(step1 == t, h, feat)

    # Critic head: VPU multiply + lane reduce instead of an N=1 MXU matmul.
    out_ref[...] = (jnp.sum(feat * wc_ref[...], axis=-1, keepdims=True)
                    + bc_ref[...])                                   # (Bp, 1)


# ----------------------- one-time parameter prep --------------------------- #
def prepare_critic_params(params):
    """Re-layout / zero-pad / pre-fuse the Critic weights. Call ONCE; the
    result is what critic_forward consumes on every call (no per-call pad)."""
    emb, wih, whh, b, wc, bc = (params["emb"], params["w_ih"], params["w_hh"],
                                params["b"], params["w_c"], params["b_c"])
    A1, H = emb.shape                       # A1 = action_dim + 1
    LANE, SUB = 128, 8
    Hp = ((H + LANE - 1) // LANE) * LANE    # lane-align each gate block
    A1p = ((A1 + SUB - 1) // SUB) * SUB     # sublane-align one-hot contraction
    f32 = jnp.float32

    # Zero padding of weight rows [H:Hp], gate columns [H:Hp] per gate, and the
    # bias guarantees the padded lanes of h and c stay exactly 0 every step.
    emb_p = jnp.zeros((A1p, Hp), f32).at[:A1, :H].set(emb.astype(f32))
    wih_p = (jnp.zeros((Hp, 4, Hp), f32)
             .at[:H, :, :H].set(wih.astype(f32).reshape(H, 4, H))
             .reshape(Hp, 4 * Hp))
    whh_p = (jnp.zeros((Hp, 4, Hp), f32)
             .at[:H, :, :H].set(whh.astype(f32).reshape(H, 4, H))
             .reshape(Hp, 4 * Hp))
    b_p = (jnp.zeros((1, 4, Hp), f32)
           .at[:, :, :H].set(b.astype(f32).reshape(1, 4, H))
           .reshape(1, 4 * Hp))
    wc_p = jnp.zeros((1, Hp), f32).at[:, :H].set(wc.astype(f32).reshape(1, H))
    bc_p = bc.astype(f32).reshape(1, 1)

    # Pre-fuse embedding with the input projection: x_t @ W_ih == row-select of
    # (Emb @ W_ih), so the kernel only needs this (A1p, 4*Hp) table (~16 KB)
    # instead of Emb (4 KB) + W_ih (256 KB).
    emb_wih = emb_p @ wih_p                                          # (A1p, 4*Hp)

    return {"emb_wih": emb_wih, "whh": whh_p, "b": b_p, "wc": wc_p, "bc": bc_p}


# ------------------------------- wrapper ----------------------------------- #
@jax.jit
def critic_forward(action_history, cur_step, prep):
    """action_history: (B, L) int32 in [0, action_dim); cur_step: (B,) int32.
    `prep` is the output of prepare_critic_params (computed once)."""
    emb_wih, whh, b, wc, bc = (prep["emb_wih"], prep["whh"], prep["b"],
                               prep["wc"], prep["bc"])
    B, L = action_history.shape
    T = L + 2
    A1p, G = emb_wih.shape
    Hp = G // 4
    Bp = max(8, ((B + 7) // 8) * 8)         # sublane-align the batch

    # ---- tiny per-call glue: SOS/EOS padding + batch pad + time-major ----
    seq = jnp.pad(action_history.astype(jnp.int32) + 1, ((0, 0), (1, 1)))   # (B, T)
    seq = jnp.pad(seq, ((0, Bp - B), (0, 0)))                               # (Bp, T)
    idx_tm = jnp.transpose(seq, (1, 0)).reshape(T * Bp, 1)                  # (T*Bp, 1)
    step2d = jnp.pad(cur_step.astype(jnp.int32), (0, Bp - B)).reshape(Bp, 1)

    vmem = pl.BlockSpec(memory_space=pltpu.MemorySpace.VMEM)
    hbm = pl.BlockSpec(memory_space=pl.ANY)     # W_hh: manual overlapped DMA

    out = pl.pallas_call(
        critic_kernel,
        out_shape=jax.ShapeDtypeStruct((Bp, 1), jnp.float32),
        in_specs=[vmem, vmem, vmem, hbm, vmem, vmem, vmem],
        out_specs=vmem,
        scratch_shapes=[
            pltpu.VMEM((T, Bp, 4 * Hp), jnp.float32),   # staged gate pre-acts
            pltpu.VMEM((Hp, 4 * Hp), jnp.float32),      # W_hh landing buffer
            pltpu.SemaphoreType.DMA,                    # W_hh copy completion
        ],
    )(idx_tm, step2d, emb_wih, whh, b, wc, bc)
    return out[:B, 0]                       # (B,)  <- .squeeze(-1) in Critic.forward


# ------------------------- pure-JAX reference ------------------------------ #
def critic_reference(action_history, cur_step, params):
    emb, wih, whh, b, wc, bc = (params["emb"], params["w_ih"], params["w_hh"],
                                params["b"], params["w_c"], params["b_c"])
    B, L = action_history.shape
    H = emb.shape[1]
    seq_idx = jnp.pad(action_history + 1, ((0, 0), (1, 1)))
    x = jnp.transpose(emb[seq_idx], (1, 0, 2)).astype(jnp.float32)  # (T, B, H)

    def body(carry, x_t):
        h, c = carry
        g = x_t @ wih + h @ whh + b
        i_g = jax.nn.sigmoid(g[:, :H])
        f_g = jax.nn.sigmoid(g[:, H:2 * H])
        g_g = jnp.tanh(g[:, 2 * H:3 * H])
        o_g = jax.nn.sigmoid(g[:, 3 * H:])
        c = f_g * c + i_g * g_g
        h = o_g * jnp.tanh(c)
        return (h, c), h

    (_, _), hs = lax.scan(body, (jnp.zeros((B, H)), jnp.zeros((B, H))), x)
    feat = hs[cur_step + 1, jnp.arange(B)]                          # (B, H)
    return (feat @ wc + bc).squeeze(-1)


# --------------------------------- main ------------------------------------ #
if __name__ == "__main__":
    B, L, ACTION_DIM, H = 2, 6, 4, 32       # T = L + 2 = 8, hidden_dim = 32
    key = jax.random.PRNGKey(0)
    k_emb, k_wih, k_whh, k_b, k_wc, k_bc, k_act, k_step = jax.random.split(key, 8)

    params = {
        "emb":  0.1 * jax.random.normal(k_emb, (ACTION_DIM + 1, H), jnp.float32),
        "w_ih": 0.1 * jax.random.normal(k_wih, (H, 4 * H), jnp.float32),
        "w_hh": 0.1 * jax.random.normal(k_whh, (H, 4 * H), jnp.float32),
        "b":    0.1 * jax.random.normal(k_b, (1, 4 * H), jnp.float32),
        "w_c":  0.1 * jax.random.normal(k_wc, (H, 1), jnp.float32),
        "b_c":  0.1 * jax.random.normal(k_bc, (1, 1), jnp.float32),
    }

    action_history = jax.random.randint(k_act, (B, L), 0, ACTION_DIM, jnp.int32)
    cur_step = jax.random.randint(k_step, (B,), 0, L, jnp.int32)

    prep = prepare_critic_params(params)            # one-time weight re-layout
    out = critic_forward(action_history, cur_step, prep)
    out = jax.block_until_ready(out)

    ref = critic_reference(action_history, cur_step, params)
    np.testing.assert_allclose(np.asarray(out), np.asarray(ref),
                               rtol=1e-4, atol=1e-4)
    assert out.shape == (B,)
    print("KERNEL_OK")
</pallas_src>

<mosaic_0001>
module attributes {stable_mosaic.version = 11 : i64} {
  func.func @critic_kernel(%arg0: memref<64x1xi32, #tpu.memory_space<vmem>>, %arg1: memref<8x1xi32, #tpu.memory_space<vmem>>, %arg2: memref<8x512xf32, #tpu.memory_space<vmem>>, %arg3: memref<128x512xf32, #tpu.memory_space<any>>, %arg4: memref<1x512xf32, #tpu.memory_space<vmem>>, %arg5: memref<1x128xf32, #tpu.memory_space<vmem>>, %arg6: memref<1x1xf32, #tpu.memory_space<vmem>>, %arg7: memref<8x1xf32, #tpu.memory_space<vmem>>, %arg8: memref<8x8x512xf32, #tpu.memory_space<vmem>>, %arg9: memref<128x512xf32, #tpu.memory_space<vmem>>, %arg10: memref<!tpu.dma_semaphore, #tpu.memory_space<semaphore_mem>>) attributes {dimension_semantics = [], scalar_prefetch = 0 : i64, scratch_operands = 3 : i64, tpu.core_type = #tpu.core_type<tc>} {
    tpu.enqueue_dma source(%arg3 : memref<128x512xf32, #tpu.memory_space<any>>) target(%arg9 : memref<128x512xf32, #tpu.memory_space<vmem>>) target_semaphore(%arg10 : memref<!tpu.dma_semaphore, #tpu.memory_space<semaphore_mem>>)
    %c0 = arith.constant 0 : index
    %c0_0 = arith.constant 0 : index
    %0 = vector.load %arg0[%c0, %c0_0] : memref<64x1xi32, #tpu.memory_space<vmem>>, vector<64x1xi32>
    %1 = tpu.iota {dimensions = array<i32: 1>} : vector<64x8xi32>
    %2 = vector.broadcast %0 : vector<64x1xi32> to vector<64x8xi32>
    %3 = arith.cmpi eq, %2, %1 : vector<64x8xi32>
    %4 = arith.extui %3 : vector<64x8xi1> to vector<64x8xi32>
    %5 = arith.sitofp %4 : vector<64x8xi32> to vector<64x8xf32>
    %c0_1 = arith.constant 0 : index
    %c0_2 = arith.constant 0 : index
    %6 = vector.load %arg2[%c0_1, %c0_2] : memref<8x512xf32, #tpu.memory_space<vmem>>, vector<8x512xf32>
    %cst = arith.constant dense<0.000000e+00> : vector<64x512xf32>
    %7 = tpu.matmul %5, %6, %cst {dimension_numbers = #tpu.dot_dimension_numbers<[1], [0], [0], [1], [0, 0, 1, 1], [], []>} : vector<64x8xf32>, vector<8x512xf32>, vector<64x512xf32> -> vector<64x512xf32>
    %c0_3 = arith.constant 0 : index
    %c0_4 = arith.constant 0 : index
    %8 = vector.load %arg4[%c0_3, %c0_4] : memref<1x512xf32, #tpu.memory_space<vmem>>, vector<1x512xf32>
    %9 = vector.broadcast %8 : vector<1x512xf32> to vector<64x512xf32>
    %10 = arith.addf %7, %9 : vector<64x512xf32>
    %11 = vector.extract_strided_slice %10 {offsets = [0, 0], sizes = [8, 512], strides = [1, 1]} : vector<64x512xf32> to vector<8x512xf32>
    %c0_5 = arith.constant 0 : index
    %c0_6 = arith.constant 0 : index
    %c0_7 = arith.constant 0 : index
    %12 = vector.load %arg8[%c0_5, %c0_6, %c0_7] : memref<8x8x512xf32, #tpu.memory_space<vmem>>, vector<1x8x512xf32>
    %13 = vector.shape_cast %12 : vector<1x8x512xf32> to vector<8x512xf32>
    %14 = vector.shape_cast %11 : vector<8x512xf32> to vector<1x8x512xf32>
    tpu.vector_store %arg8[%c0_5, %c0_6, %c0_7], %14 {strides = array<i32>} : memref<8x8x512xf32, #tpu.memory_space<vmem>>, vector<1x8x512xf32>,
    %15 = vector.extract_strided_slice %10 {offsets = [8, 0], sizes = [8, 512], strides = [1, 1]} : vector<64x512xf32> to vector<8x512xf32>
    %c1 = arith.constant 1 : index
    %c0_8 = arith.constant 0 : index
    %c0_9 = arith.constant 0 : index
    %16 = vector.load %arg8[%c1, %c0_8, %c0_9] : memref<8x8x512xf32, #tpu.memory_space<vmem>>, vector<1x8x512xf32>
    %17 = vector.shape_cast %16 : vector<1x8x512xf32> to vector<8x512xf32>
    %18 = vector.shape_cast %15 : vector<8x512xf32> to vector<1x8x512xf32>
    tpu.vector_store %arg8[%c1, %c0_8, %c0_9], %18 {strides = array<i32>} : memref<8x8x512xf32, #tpu.memory_space<vmem>>, vector<1x8x512xf32>,
    %19 = vector.extract_strided_slice %10 {offsets = [16, 0], sizes = [8, 512], strides = [1, 1]} : vector<64x512xf32> to vector<8x512xf32>
    %c2 = arith.constant 2 : index
    %c0_10 = arith.constant 0 : index
    %c0_11 = arith.constant 0 : index
    %20 = vector.load %arg8[%c2, %c0_10, %c0_11] : memref<8x8x512xf32, #tpu.memory_space<vmem>>, vector<1x8x512xf32>
    %21 = vector.shape_cast %20 : vector<1x8x512xf32> to vector<8x512xf32>
    %22 = vector.shape_cast %19 : vector<8x512xf32> to vector<1x8x512xf32>
    tpu.vector_store %arg8[%c2, %c0_10, %c0_11], %22 {strides = array<i32>} : memref<8x8x512xf32, #tpu.memory_space<vmem>>, vector<1x8x512xf32>,
    %23 = vector.extract_strided_slice %10 {offsets = [24, 0], sizes = [8, 512], strides = [1, 1]} : vector<64x512xf32> to vector<8x512xf32>
    %c3 = arith.constant 3 : index
    %c0_12 = arith.constant 0 : index
    %c0_13 = arith.constant 0 : index
    %24 = vector.load %arg8[%c3, %c0_12, %c0_13] : memref<8x8x512xf32, #tpu.memory_space<vmem>>, vector<1x8x512xf32>
    %25 = vector.shape_cast %24 : vector<1x8x512xf32> to vector<8x512xf32>
    %26 = vector.shape_cast %23 : vector<8x512xf32> to vector<1x8x512xf32>
    tpu.vector_store %arg8[%c3, %c0_12, %c0_13], %26 {strides = array<i32>} : memref<8x8x512xf32, #tpu.memory_space<vmem>>, vector<1x8x512xf32>,
    %27 = vector.extract_strided_slice %10 {offsets = [32, 0], sizes = [8, 512], strides = [1, 1]} : vector<64x512xf32> to vector<8x512xf32>
    %c4 = arith.constant 4 : index
    %c0_14 = arith.constant 0 : index
    %c0_15 = arith.constant 0 : index
    %28 = vector.load %arg8[%c4, %c0_14, %c0_15] : memref<8x8x512xf32, #tpu.memory_space<vmem>>, vector<1x8x512xf32>
    %29 = vector.shape_cast %28 : vector<1x8x512xf32> to vector<8x512xf32>
    %30 = vector.shape_cast %27 : vector<8x512xf32> to vector<1x8x512xf32>
    tpu.vector_store %arg8[%c4, %c0_14, %c0_15], %30 {strides = array<i32>} : memref<8x8x512xf32, #tpu.memory_space<vmem>>, vector<1x8x512xf32>,
    %31 = vector.extract_strided_slice %10 {offsets = [40, 0], sizes = [8, 512], strides = [1, 1]} : vector<64x512xf32> to vector<8x512xf32>
    %c5 = arith.constant 5 : index
    %c0_16 = arith.constant 0 : index
    %c0_17 = arith.constant 0 : index
    %32 = vector.load %arg8[%c5, %c0_16, %c0_17] : memref<8x8x512xf32, #tpu.memory_space<vmem>>, vector<1x8x512xf32>
    %33 = vector.shape_cast %32 : vector<1x8x512xf32> to vector<8x512xf32>
    %34 = vector.shape_cast %31 : vector<8x512xf32> to vector<1x8x512xf32>
    tpu.vector_store %arg8[%c5, %c0_16, %c0_17], %34 {strides = array<i32>} : memref<8x8x512xf32, #tpu.memory_space<vmem>>, vector<1x8x512xf32>,
    %35 = vector.extract_strided_slice %10 {offsets = [48, 0], sizes = [8, 512], strides = [1, 1]} : vector<64x512xf32> to vector<8x512xf32>
    %c6 = arith.constant 6 : index
    %c0_18 = arith.constant 0 : index
    %c0_19 = arith.constant 0 : index
    %36 = vector.load %arg8[%c6, %c0_18, %c0_19] : memref<8x8x512xf32, #tpu.memory_space<vmem>>, vector<1x8x512xf32>
    %37 = vector.shape_cast %36 : vector<1x8x512xf32> to vector<8x512xf32>
    %38 = vector.shape_cast %35 : vector<8x512xf32> to vector<1x8x512xf32>
    tpu.vector_store %arg8[%c6, %c0_18, %c0_19], %38 {strides = array<i32>} : memref<8x8x512xf32, #tpu.memory_space<vmem>>, vector<1x8x512xf32>,
    %39 = vector.extract_strided_slice %10 {offsets = [56, 0], sizes = [8, 512], strides = [1, 1]} : vector<64x512xf32> to vector<8x512xf32>
    %c7 = arith.constant 7 : index
    %c0_20 = arith.constant 0 : index
    %c0_21 = arith.constant 0 : index
    %40 = vector.load %arg8[%c7, %c0_20, %c0_21] : memref<8x8x512xf32, #tpu.memory_space<vmem>>, vector<1x8x512xf32>
    %41 = vector.shape_cast %40 : vector<1x8x512xf32> to vector<8x512xf32>
    %42 = vector.shape_cast %39 : vector<8x512xf32> to vector<1x8x512xf32>
    tpu.vector_store %arg8[%c7, %c0_20, %c0_21], %42 {strides = array<i32>} : memref<8x8x512xf32, #tpu.memory_space<vmem>>, vector<1x8x512xf32>,
    tpu.wait_dma2 semaphore(%arg10 : memref<!tpu.dma_semaphore, #tpu.memory_space<semaphore_mem>>) src(%arg3 : memref<128x512xf32, #tpu.memory_space<any>>) dst(%arg9 : memref<128x512xf32, #tpu.memory_space<vmem>>)
    %c0_22 = arith.constant 0 : index
    %c0_23 = arith.constant 0 : index
    %43 = vector.load %arg9[%c0_22, %c0_23] : memref<128x512xf32, #tpu.memory_space<vmem>>, vector<128x512xf32>
    %c0_24 = arith.constant 0 : index
    %c0_25 = arith.constant 0 : index
    %44 = vector.load %arg1[%c0_24, %c0_25] : memref<8x1xi32, #tpu.memory_space<vmem>>, vector<8x1xi32>
    %c1_i32 = arith.constant 1 : i32
    %45 = vector.broadcast %c1_i32 : i32 to vector<8x1xi32>
    %46 = arith.addi %44, %45 : vector<8x1xi32>
    %cst_26 = arith.constant 0.000000e+00 : f32
    %47 = vector.broadcast %cst_26 : f32 to vector<8x128xf32>
    %cst_27 = arith.constant 0.000000e+00 : f32
    %48 = vector.broadcast %cst_27 : f32 to vector<8x128xf32>
    %cst_28 = arith.constant 0.000000e+00 : f32
    %49 = vector.broadcast %cst_28 : f32 to vector<8x128xf32>
    %c0_29 = arith.constant 0 : index
    %c0_30 = arith.constant 0 : index
    %c0_31 = arith.constant 0 : index
    %50 = vector.load %arg8[%c0_29, %c0_30, %c0_31] : memref<8x8x512xf32, #tpu.memory_space<vmem>>, vector<1x8x512xf32>
    %51 = vector.shape_cast %50 : vector<1x8x512xf32> to vector<8x512xf32>
    %cst_32 = arith.constant dense<0.000000e+00> : vector<8x512xf32>
    %52 = tpu.matmul %47, %43, %cst_32 {dimension_numbers = #tpu.dot_dimension_numbers<[1], [0], [0], [1], [0, 0, 1, 1], [], []>} : vector<8x128xf32>, vector<128x512xf32>, vector<8x512xf32> -> vector<8x512xf32>
    %53 = arith.addf %51, %52 : vector<8x512xf32>
    %54 = vector.extract_strided_slice %53 {offsets = [0, 0], sizes = [8, 128], strides = [1, 1]} : vector<8x512xf32> to vector<8x128xf32>
    %55 = arith.negf %54 : vector<8x128xf32>
    %56 = math.exp %55 : vector<8x128xf32>
    %cst_33 = arith.constant 1.000000e+00 : f32
    %57 = vector.broadcast %cst_33 : f32 to vector<8x128xf32>
    %58 = arith.addf %57, %56 : vector<8x128xf32>
    %59 = arith.divf %57, %58 : vector<8x128xf32>
    %60 = vector.extract_strided_slice %53 {offsets = [0, 128], sizes = [8, 128], strides = [1, 1]} : vector<8x512xf32> to vector<8x128xf32>
    %61 = arith.negf %60 : vector<8x128xf32>
    %62 = math.exp %61 : vector<8x128xf32>
    %cst_34 = arith.constant 1.000000e+00 : f32
    %63 = vector.broadcast %cst_34 : f32 to vector<8x128xf32>
    %64 = arith.addf %63, %62 : vector<8x128xf32>
    %65 = arith.divf %63, %64 : vector<8x128xf32>
    %66 = vector.extract_strided_slice %53 {offsets = [0, 256], sizes = [8, 128], strides = [1, 1]} : vector<8x512xf32> to vector<8x128xf32>
    %67 = math.tanh %66 : vector<8x128xf32>
    %68 = vector.extract_strided_slice %53 {offsets = [0, 384], sizes = [8, 128], strides = [1, 1]} : vector<8x512xf32> to vector<8x128xf32>
    %69 = arith.negf %68 : vector<8x128xf32>
    %70 = math.exp %69 : vector<8x128xf32>
    %cst_35 = arith.constant 1.000000e+00 : f32
    %71 = vector.broadcast %cst_35 : f32 to vector<8x128xf32>
    %72 = arith.addf %71, %70 : vector<8x128xf32>
    %73 = arith.divf %71, %72 : vector<8x128xf32>
    %74 = arith.mulf %65, %48 : vector<8x128xf32>
    %75 = arith.mulf %59, %67 : vector<8x128xf32>
    %76 = arith.addf %74, %75 : vector<8x128xf32>
    %77 = math.tanh %76 : vector<8x128xf32>
    %78 = arith.mulf %73, %77 : vector<8x128xf32>
    %c0_i32 = arith.constant 0 : i32
    %79 = vector.broadcast %c0_i32 : i32 to vector<8x1xi32>
    %80 = arith.cmpi eq, %46, %79 : vector<8x1xi32>
    %81 = vector.shape_cast %80 : vector<8x1xi1> to vector<8x1xi1>
    %82 = vector.broadcast %81 : vector<8x1xi1> to vector<8x128xi1>
    %83 = arith.select %82, %78, %49 : vector<8x128xi1>, vector<8x128xf32>
    %c1_36 = arith.constant 1 : index
    %c0_37 = arith.constant 0 : index
    %c0_38 = arith.constant 0 : index
    %84 = vector.load %arg8[%c1_36, %c0_37, %c0_38] : memref<8x8x512xf32, #tpu.memory_space<vmem>>, vector<1x8x512xf32>
    %85 = vector.shape_cast %84 : vector<1x8x512xf32> to vector<8x512xf32>
    %cst_39 = arith.constant dense<0.000000e+00> : vector<8x512xf32>
    %86 = tpu.matmul %78, %43, %cst_39 {dimension_numbers = #tpu.dot_dimension_numbers<[1], [0], [0], [1], [0, 0, 1, 1], [], []>} : vector<8x128xf32>, vector<128x512xf32>, vector<8x512xf32> -> vector<8x512xf32>
    %87 = arith.addf %85, %86 : vector<8x512xf32>
    %88 = vector.extract_strided_slice %87 {offsets = [0, 0], sizes = [8, 128], strides = [1, 1]} : vector<8x512xf32> to vector<8x128xf32>
    %89 = arith.negf %88 : vector<8x128xf32>
    %90 = math.exp %89 : vector<8x128xf32>
    %cst_40 = arith.constant 1.000000e+00 : f32
    %91 = vector.broadcast %cst_40 : f32 to vector<8x128xf32>
    %92 = arith.addf %91, %90 : vector<8x128xf32>
    %93 = arith.divf %91, %92 : vector<8x128xf32>
    %94 = vector.extract_strided_slice %87 {offsets = [0, 128], sizes = [8, 128], strides = [1, 1]} : vector<8x512xf32> to vector<8x128xf32>
    %95 = arith.negf %94 : vector<8x128xf32>
    %96 = math.exp %95 : vector<8x128xf32>
    %cst_41 = arith.constant 1.000000e+00 : f32
    %97 = vector.broadcast %cst_41 : f32 to vector<8x128xf32>
    %98 = arith.addf %97, %96 : vector<8x128xf32>
    %99 = arith.divf %97, %98 : vector<8x128xf32>
    %100 = vector.extract_strided_slice %87 {offsets = [0, 256], sizes = [8, 128], strides = [1, 1]} : vector<8x512xf32> to vector<8x128xf32>
    %101 = math.tanh %100 : vector<8x128xf32>
    %102 = vector.extract_strided_slice %87 {offsets = [0, 384], sizes = [8, 128], strides = [1, 1]} : vector<8x512xf32> to vector<8x128xf32>
    %103 = arith.negf %102 : vector<8x128xf32>
    %104 = math.exp %103 : vector<8x128xf32>
    %cst_42 = arith.constant 1.000000e+00 : f32
    %105 = vector.broadcast %cst_42 : f32 to vector<8x128xf32>
    %106 = arith.addf %105, %104 : vector<8x128xf32>
    %107 = arith.divf %105, %106 : vector<8x128xf32>
    %108 = arith.mulf %99, %76 : vector<8x128xf32>
    %109 = arith.mulf %93, %101 : vector<8x128xf32>
    %110 = arith.addf %108, %109 : vector<8x128xf32>
    %111 = math.tanh %110 : vector<8x128xf32>
    %112 = arith.mulf %107, %111 : vector<8x128xf32>
    %c1_i32_43 = arith.constant 1 : i32
    %113 = vector.broadcast %c1_i32_43 : i32 to vector<8x1xi32>
    %114 = arith.cmpi eq, %46, %113 : vector<8x1xi32>
    %115 = vector.shape_cast %114 : vector<8x1xi1> to vector<8x1xi1>
    %116 = vector.broadcast %115 : vector<8x1xi1> to vector<8x128xi1>
    %117 = arith.select %116, %112, %83 : vector<8x128xi1>, vector<8x128xf32>
    %c2_44 = arith.constant 2 : index
    %c0_45 = arith.constant 0 : index
    %c0_46 = arith.constant 0 : index
    %118 = vector.load %arg8[%c2_44, %c0_45, %c0_46] : memref<8x8x512xf32, #tpu.memory_space<vmem>>, vector<1x8x512xf32>
    %119 = vector.shape_cast %118 : vector<1x8x512xf32> to vector<8x512xf32>
    %cst_47 = arith.constant dense<0.000000e+00> : vector<8x512xf32>
    %120 = tpu.matmul %112, %43, %cst_47 {dimension_numbers = #tpu.dot_dimension_numbers<[1], [0], [0], [1], [0, 0, 1, 1], [], []>} : vector<8x128xf32>, vector<128x512xf32>, vector<8x512xf32> -> vector<8x512xf32>
    %121 = arith.addf %119, %120 : vector<8x512xf32>
    %122 = vector.extract_strided_slice %121 {offsets = [0, 0], sizes = [8, 128], strides = [1, 1]} : vector<8x512xf32> to vector<8x128xf32>
    %123 = arith.negf %122 : vector<8x128xf32>
    %124 = math.exp %123 : vector<8x128xf32>
    %cst_48 = arith.constant 1.000000e+00 : f32
    %125 = vector.broadcast %cst_48 : f32 to vector<8x128xf32>
    %126 = arith.addf %125, %124 : vector<8x128xf32>
    %127 = arith.divf %125, %126 : vector<8x128xf32>
    %128 = vector.extract_strided_slice %121 {offsets = [0, 128], sizes = [8, 128], strides = [1, 1]} : vector<8x512xf32> to vector<8x128xf32>
    %129 = arith.negf %128 : vector<8x128xf32>
    %130 = math.exp %129 : vector<8x128xf32>
    %cst_49 = arith.constant 1.000000e+00 : f32
    %131 = vector.broadcast %cst_49 : f32 to vector<8x128xf32>
    %132 = arith.addf %131, %130 : vector<8x128xf32>
    %133 = arith.divf %131, %132 : vector<8x128xf32>
    %134 = vector.extract_strided_slice %121 {offsets = [0, 256], sizes = [8, 128], strides = [1, 1]} : vector<8x512xf32> to vector<8x128xf32>
    %135 = math.tanh %134 : vector<8x128xf32>
    %136 = vector.extract_strided_slice %121 {offsets = [0, 384], sizes = [8, 128], strides = [1, 1]} : vector<8x512xf32> to vector<8x128xf32>
    %137 = arith.negf %136 : vector<8x128xf32>
    %138 = math.exp %137 : vector<8x128xf32>
    %cst_50 = arith.constant 1.000000e+00 : f32
    %139 = vector.broadcast %cst_50 : f32 to vector<8x128xf32>
    %140 = arith.addf %139, %138 : vector<8x128xf32>
    %141 = arith.divf %139, %140 : vector<8x128xf32>
    %142 = arith.mulf %133, %110 : vector<8x128xf32>
    %143 = arith.mulf %127, %135 : vector<8x128xf32>
    %144 = arith.addf %142, %143 : vector<8x128xf32>
    %145 = math.tanh %144 : vector<8x128xf32>
    %146 = arith.mulf %141, %145 : vector<8x128xf32>
    %c2_i32 = arith.constant 2 : i32
    %147 = vector.broadcast %c2_i32 : i32 to vector<8x1xi32>
    %148 = arith.cmpi eq, %46, %147 : vector<8x1xi32>
    %149 = vector.shape_cast %148 : vector<8x1xi1> to vector<8x1xi1>
    %150 = vector.broadcast %149 : vector<8x1xi1> to vector<8x128xi1>
    %151 = arith.select %150, %146, %117 : vector<8x128xi1>, vector<8x128xf32>
    %c3_51 = arith.constant 3 : index
    %c0_52 = arith.constant 0 : index
    %c0_53 = arith.constant 0 : index
    %152 = vector.load %arg8[%c3_51, %c0_52, %c0_53] : memref<8x8x512xf32, #tpu.memory_space<vmem>>, vector<1x8x512xf32>
    %153 = vector.shape_cast %152 : vector<1x8x512xf32> to vector<8x512xf32>
    %cst_54 = arith.constant dense<0.000000e+00> : vector<8x512xf32>
    %154 = tpu.matmul %146, %43, %cst_54 {dimension_numbers = #tpu.dot_dimension_numbers<[1], [0], [0], [1], [0, 0, 1, 1], [], []>} : vector<8x128xf32>, vector<128x512xf32>, vector<8x512xf32> -> vector<8x512xf32>
    %155 = arith.addf %153, %154 : vector<8x512xf32>
    %156 = vector.extract_strided_slice %155 {offsets = [0, 0], sizes = [8, 128], strides = [1, 1]} : vector<8x512xf32> to vector<8x128xf32>
    %157 = arith.negf %156 : vector<8x128xf32>
    %158 = math.exp %157 : vector<8x128xf32>
    %cst_55 = arith.constant 1.000000e+00 : f32
    %159 = vector.broadcast %cst_55 : f32 to vector<8x128xf32>
    %160 = arith.addf %159, %158 : vector<8x128xf32>
    %161 = arith.divf %159, %160 : vector<8x128xf32>
    %162 = vector.extract_strided_slice %155 {offsets = [0, 128], sizes = [8, 128], strides = [1, 1]} : vector<8x512xf32> to vector<8x128xf32>
    %163 = arith.negf %162 : vector<8x128xf32>
    %164 = math.exp %163 : vector<8x128xf32>
    %cst_56 = arith.constant 1.000000e+00 : f32
    %165 = vector.broadcast %cst_56 : f32 to vector<8x128xf32>
    %166 = arith.addf %165, %164 : vector<8x128xf32>
    %167 = arith.divf %165, %166 : vector<8x128xf32>
    %168 = vector.extract_strided_slice %155 {offsets = [0, 256], sizes = [8, 128], strides = [1, 1]} : vector<8x512xf32> to vector<8x128xf32>
    %169 = math.tanh %168 : vector<8x128xf32>
    %170 = vector.extract_strided_slice %155 {offsets = [0, 384], sizes = [8, 128], strides = [1, 1]} : vector<8x512xf32> to vector<8x128xf32>
    %171 = arith.negf %170 : vector<8x128xf32>
    %172 = math.exp %171 : vector<8x128xf32>
    %cst_57 = arith.constant 1.000000e+00 : f32
    %173 = vector.broadcast %cst_57 : f32 to vector<8x128xf32>
    %174 = arith.addf %173, %172 : vector<8x128xf32>
    %175 = arith.divf %173, %174 : vector<8x128xf32>
    %176 = arith.mulf %167, %144 : vector<8x128xf32>
    %177 = arith.mulf %161, %169 : vector<8x128xf32>
    %178 = arith.addf %176, %177 : vector<8x128xf32>
    %179 = math.tanh %178 : vector<8x128xf32>
    %180 = arith.mulf %175, %179 : vector<8x128xf32>
    %c3_i32 = arith.constant 3 : i32
    %181 = vector.broadcast %c3_i32 : i32 to vector<8x1xi32>
    %182 = arith.cmpi eq, %46, %181 : vector<8x1xi32>
    %183 = vector.shape_cast %182 : vector<8x1xi1> to vector<8x1xi1>
    %184 = vector.broadcast %183 : vector<8x1xi1> to vector<8x128xi1>
    %185 = arith.select %184, %180, %151 : vector<8x128xi1>, vector<8x128xf32>
    %c4_58 = arith.constant 4 : index
    %c0_59 = arith.constant 0 : index
    %c0_60 = arith.constant 0 : index
    %186 = vector.load %arg8[%c4_58, %c0_59, %c0_60] : memref<8x8x512xf32, #tpu.memory_space<vmem>>, vector<1x8x512xf32>
    %187 = vector.shape_cast %186 : vector<1x8x512xf32> to vector<8x512xf32>
    %cst_61 = arith.constant dense<0.000000e+00> : vector<8x512xf32>
    %188 = tpu.matmul %180, %43, %cst_61 {dimension_numbers = #tpu.dot_dimension_numbers<[1], [0], [0], [1], [0, 0, 1, 1], [], []>} : vector<8x128xf32>, vector<128x512xf32>, vector<8x512xf32> -> vector<8x512xf32>
    %189 = arith.addf %187, %188 : vector<8x512xf32>
    %190 = vector.extract_strided_slice %189 {offsets = [0, 0], sizes = [8, 128], strides = [1, 1]} : vector<8x512xf32> to vector<8x128xf32>
    %191 = arith.negf %190 : vector<8x128xf32>
    %192 = math.exp %191 : vector<8x128xf32>
    %cst_62 = arith.constant 1.000000e+00 : f32
    %193 = vector.broadcast %cst_62 : f32 to vector<8x128xf32>
    %194 = arith.addf %193, %192 : vector<8x128xf32>
    %195 = arith.divf %193, %194 : vector<8x128xf32>
    %196 = vector.extract_strided_slice %189 {offsets = [0, 128], sizes = [8, 128], strides = [1, 1]} : vector<8x512xf32> to vector<8x128xf32>
    %197 = arith.negf %196 : vector<8x128xf32>
    %198 = math.exp %197 : vector<8x128xf32>
    %cst_63 = arith.constant 1.000000e+00 : f32
    %199 = vector.broadcast %cst_63 : f32 to vector<8x128xf32>
    %200 = arith.addf %199, %198 : vector<8x128xf32>
    %201 = arith.divf %199, %200 : vector<8x128xf32>
    %202 = vector.extract_strided_slice %189 {offsets = [0, 256], sizes = [8, 128], strides = [1, 1]} : vector<8x512xf32> to vector<8x128xf32>
    %203 = math.tanh %202 : vector<8x128xf32>
    %204 = vector.extract_strided_slice %189 {offsets = [0, 384], sizes = [8, 128], strides = [1, 1]} : vector<8x512xf32> to vector<8x128xf32>
    %205 = arith.negf %204 : vector<8x128xf32>
    %206 = math.exp %205 : vector<8x128xf32>
    %cst_64 = arith.constant 1.000000e+00 : f32
    %207 = vector.broadcast %cst_64 : f32 to vector<8x128xf32>
    %208 = arith.addf %207, %206 : vector<8x128xf32>
    %209 = arith.divf %207, %208 : vector<8x128xf32>
    %210 = arith.mulf %201, %178 : vector<8x128xf32>
    %211 = arith.mulf %195, %203 : vector<8x128xf32>
    %212 = arith.addf %210, %211 : vector<8x128xf32>
    %213 = math.tanh %212 : vector<8x128xf32>
    %214 = arith.mulf %209, %213 : vector<8x128xf32>
    %c4_i32 = arith.constant 4 : i32
    %215 = vector.broadcast %c4_i32 : i32 to vector<8x1xi32>
    %216 = arith.cmpi eq, %46, %215 : vector<8x1xi32>
    %217 = vector.shape_cast %216 : vector<8x1xi1> to vector<8x1xi1>
    %218 = vector.broadcast %217 : vector<8x1xi1> to vector<8x128xi1>
    %219 = arith.select %218, %214, %185 : vector<8x128xi1>, vector<8x128xf32>
    %c5_65 = arith.constant 5 : index
    %c0_66 = arith.constant 0 : index
    %c0_67 = arith.constant 0 : index
    %220 = vector.load %arg8[%c5_65, %c0_66, %c0_67] : memref<8x8x512xf32, #tpu.memory_space<vmem>>, vector<1x8x512xf32>
    %221 = vector.shape_cast %220 : vector<1x8x512xf32> to vector<8x512xf32>
    %cst_68 = arith.constant dense<0.000000e+00> : vector<8x512xf32>
    %222 = tpu.matmul %214, %43, %cst_68 {dimension_numbers = #tpu.dot_dimension_numbers<[1], [0], [0], [1], [0, 0, 1, 1], [], []>} : vector<8x128xf32>, vector<128x512xf32>, vector<8x512xf32> -> vector<8x512xf32>
    %223 = arith.addf %221, %222 : vector<8x512xf32>
    %224 = vector.extract_strided_slice %223 {offsets = [0, 0], sizes = [8, 128], strides = [1, 1]} : vector<8x512xf32> to vector<8x128xf32>
    %225 = arith.negf %224 : vector<8x128xf32>
    %226 = math.exp %225 : vector<8x128xf32>
    %cst_69 = arith.constant 1.000000e+00 : f32
    %227 = vector.broadcast %cst_69 : f32 to vector<8x128xf32>
    %228 = arith.addf %227, %226 : vector<8x128xf32>
    %229 = arith.divf %227, %228 : vector<8x128xf32>
    %230 = vector.extract_strided_slice %223 {offsets = [0, 128], sizes = [8, 128], strides = [1, 1]} : vector<8x512xf32> to vector<8x128xf32>
    %231 = arith.negf %230 : vector<8x128xf32>
    %232 = math.exp %231 : vector<8x128xf32>
    %cst_70 = arith.constant 1.000000e+00 : f32
    %233 = vector.broadcast %cst_70 : f32 to vector<8x128xf32>
    %234 = arith.addf %233, %232 : vector<8x128xf32>
    %235 = arith.divf %233, %234 : vector<8x128xf32>
    %236 = vector.extract_strided_slice %223 {offsets = [0, 256], sizes = [8, 128], strides = [1, 1]} : vector<8x512xf32> to vector<8x128xf32>
    %237 = math.tanh %236 : vector<8x128xf32>
    %238 = vector.extract_strided_slice %223 {offsets = [0, 384], sizes = [8, 128], strides = [1, 1]} : vector<8x512xf32> to vector<8x128xf32>
    %239 = arith.negf %238 : vector<8x128xf32>
    %240 = math.exp %239 : vector<8x128xf32>
    %cst_71 = arith.constant 1.000000e+00 : f32
    %241 = vector.broadcast %cst_71 : f32 to vector<8x128xf32>
    %242 = arith.addf %241, %240 : vector<8x128xf32>
    %243 = arith.divf %241, %242 : vector<8x128xf32>
    %244 = arith.mulf %235, %212 : vector<8x128xf32>
    %245 = arith.mulf %229, %237 : vector<8x128xf32>
    %246 = arith.addf %244, %245 : vector<8x128xf32>
    %247 = math.tanh %246 : vector<8x128xf32>
    %248 = arith.mulf %243, %247 : vector<8x128xf32>
    %c5_i32 = arith.constant 5 : i32
    %249 = vector.broadcast %c5_i32 : i32 to vector<8x1xi32>
    %250 = arith.cmpi eq, %46, %249 : vector<8x1xi32>
    %251 = vector.shape_cast %250 : vector<8x1xi1> to vector<8x1xi1>
    %252 = vector.broadcast %251 : vector<8x1xi1> to vector<8x128xi1>
    %253 = arith.select %252, %248, %219 : vector<8x128xi1>, vector<8x128xf32>
    %c6_72 = arith.constant 6 : index
    %c0_73 = arith.constant 0 : index
    %c0_74 = arith.constant 0 : index
    %254 = vector.load %arg8[%c6_72, %c0_73, %c0_74] : memref<8x8x512xf32, #tpu.memory_space<vmem>>, vector<1x8x512xf32>
    %255 = vector.shape_cast %254 : vector<1x8x512xf32> to vector<8x512xf32>
    %cst_75 = arith.constant dense<0.000000e+00> : vector<8x512xf32>
    %256 = tpu.matmul %248, %43, %cst_75 {dimension_numbers = #tpu.dot_dimension_numbers<[1], [0], [0], [1], [0, 0, 1, 1], [], []>} : vector<8x128xf32>, vector<128x512xf32>, vector<8x512xf32> -> vector<8x512xf32>
    %257 = arith.addf %255, %256 : vector<8x512xf32>
    %258 = vector.extract_strided_slice %257 {offsets = [0, 0], sizes = [8, 128], strides = [1, 1]} : vector<8x512xf32> to vector<8x128xf32>
    %259 = arith.negf %258 : vector<8x128xf32>
    %260 = math.exp %259 : vector<8x128xf32>
    %cst_76 = arith.constant 1.000000e+00 : f32
    %261 = vector.broadcast %cst_76 : f32 to vector<8x128xf32>
    %262 = arith.addf %261, %260 : vector<8x128xf32>
    %263 = arith.divf %261, %262 : vector<8x128xf32>
    %264 = vector.extract_strided_slice %257 {offsets = [0, 128], sizes = [8, 128], strides = [1, 1]} : vector<8x512xf32> to vector<8x128xf32>
    %265 = arith.negf %264 : vector<8x128xf32>
    %266 = math.exp %265 : vector<8x128xf32>
    %cst_77 = arith.constant 1.000000e+00 : f32
    %267 = vector.broadcast %cst_77 : f32 to vector<8x128xf32>
    %268 = arith.addf %267, %266 : vector<8x128xf32>
    %269 = arith.divf %267, %268 : vector<8x128xf32>
    %270 = vector.extract_strided_slice %257 {offsets = [0, 256], sizes = [8, 128], strides = [1, 1]} : vector<8x512xf32> to vector<8x128xf32>
    %271 = math.tanh %270 : vector<8x128xf32>
    %272 = vector.extract_strided_slice %257 {offsets = [0, 384], sizes = [8, 128], strides = [1, 1]} : vector<8x512xf32> to vector<8x128xf32>
    %273 = arith.negf %272 : vector<8x128xf32>
    %274 = math.exp %273 : vector<8x128xf32>
    %cst_78 = arith.constant 1.000000e+00 : f32
    %275 = vector.broadcast %cst_78 : f32 to vector<8x128xf32>
    %276 = arith.addf %275, %274 : vector<8x128xf32>
    %277 = arith.divf %275, %276 : vector<8x128xf32>
    %278 = arith.mulf %269, %246 : vector<8x128xf32>
    %279 = arith.mulf %263, %271 : vector<8x128xf32>
    %280 = arith.addf %278, %279 : vector<8x128xf32>
    %281 = math.tanh %280 : vector<8x128xf32>
    %282 = arith.mulf %277, %281 : vector<8x128xf32>
    %c6_i32 = arith.constant 6 : i32
    %283 = vector.broadcast %c6_i32 : i32 to vector<8x1xi32>
    %284 = arith.cmpi eq, %46, %283 : vector<8x1xi32>
    %285 = vector.shape_cast %284 : vector<8x1xi1> to vector<8x1xi1>
    %286 = vector.broadcast %285 : vector<8x1xi1> to vector<8x128xi1>
    %287 = arith.select %286, %282, %253 : vector<8x128xi1>, vector<8x128xf32>
    %c7_79 = arith.constant 7 : index
    %c0_80 = arith.constant 0 : index
    %c0_81 = arith.constant 0 : index
    %288 = vector.load %arg8[%c7_79, %c0_80, %c0_81] : memref<8x8x512xf32, #tpu.memory_space<vmem>>, vector<1x8x512xf32>
    %289 = vector.shape_cast %288 : vector<1x8x512xf32> to vector<8x512xf32>
    %cst_82 = arith.constant dense<0.000000e+00> : vector<8x512xf32>
    %290 = tpu.matmul %282, %43, %cst_82 {dimension_numbers = #tpu.dot_dimension_numbers<[1], [0], [0], [1], [0, 0, 1, 1], [], []>} : vector<8x128xf32>, vector<128x512xf32>, vector<8x512xf32> -> vector<8x512xf32>
    %291 = arith.addf %289, %290 : vector<8x512xf32>
    %292 = vector.extract_strided_slice %291 {offsets = [0, 0], sizes = [8, 128], strides = [1, 1]} : vector<8x512xf32> to vector<8x128xf32>
    %293 = arith.negf %292 : vector<8x128xf32>
    %294 = math.exp %293 : vector<8x128xf32>
    %cst_83 = arith.constant 1.000000e+00 : f32
    %295 = vector.broadcast %cst_83 : f32 to vector<8x128xf32>
    %296 = arith.addf %295, %294 : vector<8x128xf32>
    %297 = arith.divf %295, %296 : vector<8x128xf32>
    %298 = vector.extract_strided_slice %291 {offsets = [0, 128], sizes = [8, 128], strides = [1, 1]} : vector<8x512xf32> to vector<8x128xf32>
    %299 = arith.negf %298 : vector<8x128xf32>
    %300 = math.exp %299 : vector<8x128xf32>
    %cst_84 = arith.constant 1.000000e+00 : f32
    %301 = vector.broadcast %cst_84 : f32 to vector<8x128xf32>
    %302 = arith.addf %301, %300 : vector<8x128xf32>
    %303 = arith.divf %301, %302 : vector<8x128xf32>
    %304 = vector.extract_strided_slice %291 {offsets = [0, 256], sizes = [8, 128], strides = [1, 1]} : vector<8x512xf32> to vector<8x128xf32>
    %305 = math.tanh %304 : vector<8x128xf32>
    %306 = vector.extract_strided_slice %291 {offsets = [0, 384], sizes = [8, 128], strides = [1, 1]} : vector<8x512xf32> to vector<8x128xf32>
    %307 = arith.negf %306 : vector<8x128xf32>
    %308 = math.exp %307 : vector<8x128xf32>
    %cst_85 = arith.constant 1.000000e+00 : f32
    %309 = vector.broadcast %cst_85 : f32 to vector<8x128xf32>
    %310 = arith.addf %309, %308 : vector<8x128xf32>
    %311 = arith.divf %309, %310 : vector<8x128xf32>
    %312 = arith.mulf %303, %280 : vector<8x128xf32>
    %313 = arith.mulf %297, %305 : vector<8x128xf32>
    %314 = arith.addf %312, %313 : vector<8x128xf32>
    %315 = math.tanh %314 : vector<8x128xf32>
    %316 = arith.mulf %311, %315 : vector<8x128xf32>
    %c7_i32 = arith.constant 7 : i32
    %317 = vector.broadcast %c7_i32 : i32 to vector<8x1xi32>
    %318 = arith.cmpi eq, %46, %317 : vector<8x1xi32>
    %319 = vector.shape_cast %318 : vector<8x1xi1> to vector<8x1xi1>
    %320 = vector.broadcast %319 : vector<8x1xi1> to vector<8x128xi1>
    %321 = arith.select %320, %316, %287 : vector<8x128xi1>, vector<8x128xf32>
    %c0_86 = arith.constant 0 : index
    %c0_87 = arith.constant 0 : index
    %322 = vector.load %arg5[%c0_86, %c0_87] : memref<1x128xf32, #tpu.memory_space<vmem>>, vector<1x128xf32>
    %323 = vector.broadcast %322 : vector<1x128xf32> to vector<8x128xf32>
    %324 = arith.mulf %321, %323 : vector<8x128xf32>
    %cst_88 = arith.constant dense<0.000000e+00> : vector<8xf32>
    %325 = vector.multi_reduction <add>, %324, %cst_88 [1] : vector<8x128xf32> to vector<8xf32>
    %326 = vector.shape_cast %325 : vector<8xf32> to vector<8x1xf32>
    %c0_89 = arith.constant 0 : index
    %c0_90 = arith.constant 0 : index
    %327 = vector.load %arg6[%c0_89, %c0_90] : memref<1x1xf32, #tpu.memory_space<vmem>>, vector<1x1xf32>
    %328 = vector.broadcast %327 : vector<1x1xf32> to vector<8x1xf32>
    %329 = arith.addf %326, %328 : vector<8x1xf32>
    %c0_91 = arith.constant 0 : index
    %c0_92 = arith.constant 0 : index
    %330 = vector.load %arg7[%c0_91, %c0_92] : memref<8x1xf32, #tpu.memory_space<vmem>>, vector<8x1xf32>
    tpu.vector_store %arg7[%c0_91, %c0_92], %329 {strides = array<i32>} : memref<8x1xf32, #tpu.memory_space<vmem>>, vector<8x1xf32>,
    return
  }
}

</mosaic_0001>

<llo_original>
// kernel: critic_forward.1
$region0: #{critic_forward.1}
  #allocation0 [shape = 'u32[]', space=smem, size = 0x4, offset = 0x4, fixed_abs, tag = 'smem constant byte address 0x4 - core index']
  #allocation1 [shape = 'u32[144,128]{1,0:T(1,128)}', space=vmem, size = 0x12000, scoped, tag = 'internal scratch']
  #allocation2 [shape = 'f32[8,8,512]{2,1,0:T(8,128)}', space=vmem, size = 0x20000, scoped, tag = 'scratch operand']
  #allocation3 [shape = 'f32[128,512]{1,0:T(8,128)}', space=vmem, size = 0x40000, scoped, tag = 'scratch operand']
  #allocation4 [shape = 's32[1]{0}', space=sflag, size = 0x4, scoped, tag = 'scratch operand']
  #allocation5 [shape = 'f32[1,1]{1,0:T(1,128)S(1)}', space=vmem, size = 0x200, scoped, tag = 'scoped memory for critic_forward.1']
  #allocation6 [shape = 's32[]', space=sflag, size = 0x4, offset = 0, fixed_abs, tag = 'sflag constant byte address 0x0 - dummy sync flag']
  #allocation7 [shape = 's32[]', space=sflag, size = 0x4, offset = 0, fixed_abs, tag = 'sflag constant byte address 0x0 - dummy sync flag']
  #allocation8 [shape = 'u32[]', space=smem, size = 0x4, offset = 0x44, fixed_abs, tag = 'smem constant byte address 0x44 - assertion arg 0']
  #allocation9 [shape = 'u32[]', space=smem, size = 0x4, offset = 0x48, fixed_abs, tag = 'smem constant byte address 0x48 - assertion arg 1']
  %s0 = inlined_call_operand.vmem [shape: s32[64,1], index: 0, kind: input, shape index: {}]
  %s1 = inlined_call_operand.vmem [shape: s32[8,1], index: 1, kind: input, shape index: {}]
  %s2 = inlined_call_operand.vmem [shape: f32[8,512], index: 2, kind: input, shape index: {}]
  %s3 = inlined_call_operand.hbm [shape: f32[128,512], index: 3, kind: input, shape index: {}]
  %s4 = inlined_call_operand.vmem [shape: f32[1,512], index: 4, kind: input, shape index: {}]
  %s5 = inlined_call_operand.vmem [shape: f32[1,128], index: 5, kind: input, shape index: {}]
  %s6 = inlined_call_operand.<no memory space> [shape: f32[1,1], index: 6, kind: input, shape index: {}]
  %s7 = inlined_call_operand.vmem [shape: f32[8,1], index: 7, kind: output, shape index: {}]
  %s8 = sld [smem:[#allocation0]]
  $region38: #{critic_forward.1} parent=0
    _
  %s10 = ssub.s32 1, %s8
  %s11 = scalar_select 0, %s10, %s8
  %v12 = vstv %s6
  %13 = vst [vmem:[#allocation5] sm:$0x1] %v12
  // Predicated region
  $region2: #{critic_forward.1} parent=0 // pred_check
    _
  $region3: #{critic_forward.1} parent=0 // pred_check_branch
    %15 = sbr.rel (0) target = $region5
  $region4: #{critic_forward.1} parent=0 // pred_region
    _
  $region5: #{critic_forward.1} parent=0 // pred_fallthru
    _
  // Predicated region
  $region6: #{critic_forward.1} parent=0 // pred_check
    _
  $region7: #{critic_forward.1} parent=0 // pred_check_branch
    %17 = sbr.rel (0) target = $region9
  $region8: #{critic_forward.1} parent=0 // pred_region
    _
  $region9: #{critic_forward.1} parent=0 // pred_fallthru
    _
  // Predicated region
  $region10: #{critic_forward.1} parent=0 // pred_check
    _
  $region11: #{critic_forward.1} parent=0 // pred_check_branch
    %19 = sbr.rel (0) target = $region13
  $region12: #{critic_forward.1} parent=0 // pred_region
    _
  $region13: #{critic_forward.1} parent=0 // pred_fallthru
    _
  // Predicated region
  $region14: #{critic_forward.1} parent=0 // pred_check
    _
  $region15: #{critic_forward.1} parent=0 // pred_check_branch
    %21 = sbr.rel (0) target = $region17
  $region16: #{critic_forward.1} parent=0 // pred_region
    _
  $region17: #{critic_forward.1} parent=0 // pred_fallthru
    _
  // Predicated region
  $region18: #{critic_forward.1} parent=0 // pred_check
    _
  $region19: #{critic_forward.1} parent=0 // pred_check_branch
    %23 = sbr.rel (0) target = $region21
  $region20: #{critic_forward.1} parent=0 // pred_region
    _
  $region21: #{critic_forward.1} parent=0 // pred_fallthru
    _
  // Predicated region
  $region22: #{critic_forward.1} parent=0 // pred_check
    _
  $region23: #{critic_forward.1} parent=0 // pred_check_branch
    %25 = sbr.rel (0) target = $region25
  $region24: #{critic_forward.1} parent=0 // pred_region
    _
  $region25: #{critic_forward.1} parent=0 // pred_fallthru
    _
  // Predicated region
  $region26: #{critic_forward.1} parent=0 // pred_check
    _
  $region27: #{critic_forward.1} parent=0 // pred_check_branch
    %27 = sbr.rel target = $region29
  $region28: #{critic_forward.1} parent=0 // pred_region
    %28 = sst [smem:[#allocation8]] [#allocation7]
    %29 = sst [smem:[#allocation9]] [#allocation6]
  $region29: #{critic_forward.1} parent=0 // pred_fallthru
    _
  %31 = shalt.err (0)
  %s33 = sshll.u32 [#allocation3], 4
  %s34 = int_to_ptr.vmem [resolvable:$true] %s33
  %36 = dma.hbm_to_vmem [thread:$0]  %s3, 8192, %s34, [#allocation4]
  %v37 = vld [vmem:[%s0] sm:$0xff]
  %v38 = vld [vmem:[%s0 + $0x8] sm:$0xff]
  %v39 = vld [vmem:[%s0 + $0x10] sm:$0xff]
  %v40 = vld [vmem:[%s0 + $0x18] sm:$0xff]
  %v41 = vld [vmem:[%s0 + $0x20] sm:$0xff]
  %v42 = vld [vmem:[%s0 + $0x28] sm:$0xff]
  %v43 = vld [vmem:[%s0 + $0x30] sm:$0xff]
  %v44 = vld [vmem:[%s0 + $0x38] sm:$0xff]
  %v45 = vlaneseq
  %v46 = vand.u32 %v45, 127
  %47 = vset.pattern.permute.xlu0 0
  %48 = vperm.xlu0 %47, %v37
  %v49 = vpop.permute.xlu0 %48
  %50 = vset.pattern.permute.xlu0 0
  %51 = vperm.xlu0 %50, %v38
  %v52 = vpop.permute.xlu0 %51
  %53 = vset.pattern.permute.xlu0 0
  %54 = vperm.xlu0 %53, %v39
  %v55 = vpop.permute.xlu0 %54
  %56 = vset.pattern.permute.xlu0 0
  %57 = vperm.xlu0 %56, %v40
  %v58 = vpop.permute.xlu0 %57
  %59 = vset.pattern.permute.xlu0 0
  %60 = vperm.xlu0 %59, %v41
  %v61 = vpop.permute.xlu0 %60
  %62 = vset.pattern.permute.xlu0 0
  %63 = vperm.xlu0 %62, %v42
  %v64 = vpop.permute.xlu0 %63
  %65 = vset.pattern.permute.xlu0 0
  %66 = vperm.xlu0 %65, %v43
  %v67 = vpop.permute.xlu0 %66
  %68 = vset.pattern.permute.xlu0 0
  %69 = vperm.xlu0 %68, %v44
  %v70 = vpop.permute.xlu0 %69
  %vm71 = vcmp.eq.s32.totalorder %v49, %v46
  %vm72 = vcmp.eq.s32.totalorder %v52, %v46
  %vm73 = vcmp.eq.s32.totalorder %v55, %v46
  %vm74 = vcmp.eq.s32.totalorder %v58, %v46
  %vm75 = vcmp.eq.s32.totalorder %v61, %v46
  %vm76 = vcmp.eq.s32.totalorder %v64, %v46
  %vm77 = vcmp.eq.s32.totalorder %v67, %v46
  %vm78 = vcmp.eq.s32.totalorder %v70, %v46
  %v79 = vsel %vm71, 1, 0
  %v80 = vsel %vm72, 1, 0
  %v81 = vsel %vm73, 1, 0
  %v82 = vsel %vm74, 1, 0
  %v83 = vsel %vm75, 1, 0
  %v84 = vsel %vm76, 1, 0
  %v85 = vsel %vm77, 1, 0
  %v86 = vsel %vm78, 1, 0
  %v87 = vcvt.s32.f32 %v79
  %v88 = vcvt.s32.f32 %v80
  %v89 = vcvt.s32.f32 %v81
  %v90 = vcvt.s32.f32 %v82
  %v91 = vcvt.s32.f32 %v83
  %v92 = vcvt.s32.f32 %v84
  %v93 = vcvt.s32.f32 %v85
  %v94 = vcvt.s32.f32 %v86
  %v95 = vld [vmem:[%s2] sm:$0xff]
  %v96 = vld [vmem:[%s2 + $0x8] sm:$0xff]
  %v97 = vld [vmem:[%s2 + $0x10] sm:$0xff]
  %v98 = vld [vmem:[%s2 + $0x18] sm:$0xff]
  %v99 = vld [vmem:[%s4] sm:$0xf]
  %v101 = vlaneseq
  %v102 = vshrl.u32 %v101, 7
  %v103 = vsub.s32 0, %v102
  %v104 = vrot.slane %v99, %v103
  %v105 = vlaneseq
  %v106 = vshrl.u32 %v105, 7
  %v107 = vsub.s32 1, %v106
  %v108 = vrot.slane %v99, %v107
  %v109 = vlaneseq
  %v110 = vshrl.u32 %v109, 7
  %v111 = vsub.s32 2, %v110
  %v112 = vrot.slane %v99, %v111
  %v113 = vlaneseq
  %v114 = vshrl.u32 %v113, 7
  %v115 = vsub.s32 3, %v114
  %v116 = vrot.slane %v99, %v115
  %vm121 = vcmask 64512
  %v123 = vsel %vm121, %v87, 0
  %v126 = vsel %vm121, %v88, 0
  %v129 = vsel %vm121, %v89, 0
  %v132 = vsel %vm121, %v90, 0
  %v135 = vsel %vm121, %v91, 0
  %v138 = vsel %vm121, %v92, 0
  %v141 = vsel %vm121, %v93, 0
  %v144 = vsel %vm121, %v94, 0
  %146 = vmatprep.subr.mxu0 %v96
  %147 = vmatpush1.msra.mxu0 %v95
  %148 = vmatprep.subr.mxu0 0.0
  %149 = vmatpush1.msra.mxu0 0.0
  %150 = vmatprep.subr.mxu0 0.0
  %151 = vmatpush1.msra.mxu0 0.0
  %152 = vmatprep.subr.mxu0 0.0
  %153 = vmatpush1.msra.mxu0 0.0
  %154 = vmatprep.subr.mxu0 0.0
  %155 = vmatpush1.msra.mxu0 0.0
  %156 = vmatprep.subr.mxu0 0.0
  %157 = vmatpush1.msra.mxu0 0.0
  %158 = vmatprep.subr.mxu0 0.0
  %159 = vmatpush1.msra.mxu0 0.0
  %160 = vmatprep.subr.mxu0 0.0
  %161 = vmatpush1.msra.mxu0 0.0
  %162 = vmatprep.subr.mxu0 0.0
  %163 = vmatpush1.msra.mxu0 0.0
  %164 = vmatprep.subr.mxu0 0.0
  %165 = vmatpush1.msra.mxu0 0.0
  %166 = vmatprep.subr.mxu0 0.0
  %167 = vmatpush1.msra.mxu0 0.0
  %168 = vmatprep.subr.mxu0 0.0
  %169 = vmatpush1.msra.mxu0 0.0
  %170 = vmatprep.subr.mxu0 0.0
  %171 = vmatpush1.msra.mxu0 0.0
  %172 = vmatprep.subr.mxu0 0.0
  %173 = vmatpush1.msra.mxu0 0.0
  %174 = vmatprep.subr.mxu0 0.0
  %175 = vmatpush1.msra.mxu0 0.0
  %176 = vmatprep.subr.mxu0 0.0
  %177 = vmatpush1.msra.mxu0 0.0
  %178 = vmatprep.subr.mxu0 0.0
  %179 = vmatpush1.msra.mxu0 0.0
  %180 = vmatprep.subr.mxu0 0.0
  %181 = vmatpush1.msra.mxu0 0.0
  %182 = vmatprep.subr.mxu0 0.0
  %183 = vmatpush1.msra.mxu0 0.0
  %184 = vmatprep.subr.mxu0 0.0
  %185 = vmatpush1.msra.mxu0 0.0
  %186 = vmatprep.subr.mxu0 0.0
  %187 = vmatpush1.msra.mxu0 0.0
  %188 = vmatprep.subr.mxu0 0.0
  %189 = vmatpush1.msra.mxu0 0.0
  %190 = vmatprep.subr.mxu0 0.0
  %191 = vmatpush1.msra.mxu0 0.0
  %192 = vmatprep.subr.mxu0 0.0
  %193 = vmatpush1.msra.mxu0 0.0
  %194 = vmatprep.subr.mxu0 0.0
  %195 = vmatpush1.msra.mxu0 0.0
  %196 = vmatprep.subr.mxu0 0.0
  %197 = vmatpush1.msra.mxu0 0.0
  %198 = vmatprep.subr.mxu0 0.0
  %199 = vmatpush1.msra.mxu0 0.0
  %200 = vmatprep.subr.mxu0 0.0
  %201 = vmatpush1.msra.mxu0 0.0
  %202 = vmatprep.subr.mxu0 0.0
  %203 = vmatpush1.msra.mxu0 0.0
  %204 = vmatprep.subr.mxu0 0.0
  %205 = vmatpush1.msra.mxu0 0.0
  %206 = vmatprep.subr.mxu0 0.0
  %207 = vmatpush1.msra.mxu0 0.0
  %208 = vmatprep.subr.mxu0 0.0
  %209 = vmatpush1.msra.mxu0 0.0
  %210 = vmatprep.mubr.f32.mxu0 0.0
  %211 = vmatmul.mubr.f32.gmra.mrb[0].mxu0 %v123
  %v212 = vpop.f32.mrb[0].mxu0
  %v213 = vadd.f32 %v104, %v212
  %v214 = vpop.f32.mrb[0].mxu0
  %v215 = vadd.f32 %v108, %v214
  %216 = vmatprep.mubr.f32.mxu0 0.0
  %217 = vmatmul.mubr.f32.gmra.mrb[0].mxu0 %v126
  %v218 = vpop.f32.mrb[0].mxu0
  %v219 = vadd.f32 %v104, %v218
  %v220 = vpop.f32.mrb[0].mxu0
  %v221 = vadd.f32 %v108, %v220
  %222 = vmatprep.mubr.f32.mxu0 0.0
  %223 = vmatmul.mubr.f32.gmra.mrb[0].mxu0 %v129
  %v224 = vpop.f32.mrb[0].mxu0
  %v225 = vadd.f32 %v104, %v224
  %v226 = vpop.f32.mrb[0].mxu0
  %v227 = vadd.f32 %v108, %v226
  %228 = vmatprep.mubr.f32.mxu0 0.0
  %229 = vmatmul.mubr.f32.gmra.mrb[0].mxu0 %v132
  %v230 = vpop.f32.mrb[0].mxu0
  %v231 = vadd.f32 %v104, %v230
  %v232 = vpop.f32.mrb[0].mxu0
  %v233 = vadd.f32 %v108, %v232
  %234 = vmatprep.mubr.f32.mxu0 0.0
  %235 = vmatmul.mubr.f32.gmra.mrb[0].mxu0 %v135
  %v236 = vpop.f32.mrb[0].mxu0
  %v237 = vadd.f32 %v104, %v236
  %v238 = vpop.f32.mrb[0].mxu0
  %v239 = vadd.f32 %v108, %v238
  %240 = vmatprep.mubr.f32.mxu0 0.0
  %241 = vmatmul.mubr.f32.gmra.mrb[0].mxu0 %v138
  %v242 = vpop.f32.mrb[0].mxu0
  %v243 = vadd.f32 %v104, %v242
  %v244 = vpop.f32.mrb[0].mxu0
  %v245 = vadd.f32 %v108, %v244
  %246 = vmatprep.mubr.f32.mxu0 0.0
  %247 = vmatmul.mubr.f32.gmra.mrb[0].mxu0 %v141
  %v248 = vpop.f32.mrb[0].mxu0
  %v249 = vadd.f32 %v104, %v248
  %v250 = vpop.f32.mrb[0].mxu0
  %v251 = vadd.f32 %v108, %v250
  %252 = vmatprep.mubr.f32.mxu0 0.0
  %253 = vmatmul.mubr.f32.gmra.mrb[0].mxu0 %v144
  %v254 = vpop.f32.mrb[0].mxu0
  %v255 = vadd.f32 %v104, %v254
  %v256 = vpop.f32.mrb[0].mxu0
  %v257 = vadd.f32 %v108, %v256
  %258 = vdwg.mxu0
  %259 = vmatprep.subr.mxu0 %v98
  %260 = vmatpush1.msra.mxu0 %v97
  %261 = vmatprep.subr.mxu0 0.0
  %262 = vmatpush1.msra.mxu0 0.0
  %263 = vmatprep.subr.mxu0 0.0
  %264 = vmatpush1.msra.mxu0 0.0
  %265 = vmatprep.subr.mxu0 0.0
  %266 = vmatpush1.msra.mxu0 0.0
  %267 = vmatprep.subr.mxu0 0.0
  %268 = vmatpush1.msra.mxu0 0.0
  %269 = vmatprep.subr.mxu0 0.0
  %270 = vmatpush1.msra.mxu0 0.0
  %271 = vmatprep.subr.mxu0 0.0
  %272 = vmatpush1.msra.mxu0 0.0
  %273 = vmatprep.subr.mxu0 0.0
  %274 = vmatpush1.msra.mxu0 0.0
  %275 = vmatprep.subr.mxu0 0.0
  %276 = vmatpush1.msra.mxu0 0.0
  %277 = vmatprep.subr.mxu0 0.0
  %278 = vmatpush1.msra.mxu0 0.0
  %279 = vmatprep.subr.mxu0 0.0
  %280 = vmatpush1.msra.mxu0 0.0
  %281 = vmatprep.subr.mxu0 0.0
  %282 = vmatpush1.msra.mxu0 0.0
  %283 = vmatprep.subr.mxu0 0.0
  %284 = vmatpush1.msra.mxu0 0.0
  %285 = vmatprep.subr.mxu0 0.0
  %286 = vmatpush1.msra.mxu0 0.0
  %287 = vmatprep.subr.mxu0 0.0
  %288 = vmatpush1.msra.mxu0 0.0
  %289 = vmatprep.subr.mxu0 0.0
  %290 = vmatpush1.msra.mxu0 0.0
  %291 = vmatprep.subr.mxu0 0.0
  %292 = vmatpush1.msra.mxu0 0.0
  %293 = vmatprep.subr.mxu0 0.0
  %294 = vmatpush1.msra.mxu0 0.0
  %295 = vmatprep.subr.mxu0 0.0
  %296 = vmatpush1.msra.mxu0 0.0
  %297 = vmatprep.subr.mxu0 0.0
  %298 = vmatpush1.msra.mxu0 0.0
  %299 = vmatprep.subr.mxu0 0.0
  %300 = vmatpush1.msra.mxu0 0.0
  %301 = vmatprep.subr.mxu0 0.0
  %302 = vmatpush1.msra.mxu0 0.0
  %303 = vmatprep.subr.mxu0 0.0
  %304 = vmatpush1.msra.mxu0 0.0
  %305 = vmatprep.subr.mxu0 0.0
  %306 = vmatpush1.msra.mxu0 0.0
  %307 = vmatprep.subr.mxu0 0.0
  %308 = vmatpush1.msra.mxu0 0.0
  %309 = vmatprep.subr.mxu0 0.0
  %310 = vmatpush1.msra.mxu0 0.0
  %311 = vmatprep.subr.mxu0 0.0
  %312 = vmatpush1.msra.mxu0 0.0
  %313 = vmatprep.subr.mxu0 0.0
  %314 = vmatpush1.msra.mxu0 0.0
  %315 = vmatprep.subr.mxu0 0.0
  %316 = vmatpush1.msra.mxu0 0.0
  %317 = vmatprep.subr.mxu0 0.0
  %318 = vmatpush1.msra.mxu0 0.0
  %319 = vmatprep.subr.mxu0 0.0
  %320 = vmatpush1.msra.mxu0 0.0
  %321 = vmatprep.subr.mxu0 0.0
  %322 = vmatpush1.msra.mxu0 0.0
  %323 = vmatprep.mubr.f32.mxu0 0.0
  %324 = vmatmul.mubr.f32.gmra.mrb[0].mxu0 %v123
  %v325 = vpop.f32.mrb[0].mxu0
  %v326 = vadd.f32 %v112, %v325
  %v327 = vpop.f32.mrb[0].mxu0
  %v328 = vadd.f32 %v116, %v327
  %329 = vmatprep.mubr.f32.mxu0 0.0
  %330 = vmatmul.mubr.f32.gmra.mrb[0].mxu0 %v126
  %v331 = vpop.f32.mrb[0].mxu0
  %v332 = vadd.f32 %v112, %v331
  %v333 = vpop.f32.mrb[0].mxu0
  %v334 = vadd.f32 %v116, %v333
  %335 = vmatprep.mubr.f32.mxu0 0.0
  %336 = vmatmul.mubr.f32.gmra.mrb[0].mxu0 %v129
  %v337 = vpop.f32.mrb[0].mxu0
  %v338 = vadd.f32 %v112, %v337
  %v339 = vpop.f32.mrb[0].mxu0
  %v340 = vadd.f32 %v116, %v339
  %341 = vmatprep.mubr.f32.mxu0 0.0
  %342 = vmatmul.mubr.f32.gmra.mrb[0].mxu0 %v132
  %v343 = vpop.f32.mrb[0].mxu0
  %v344 = vadd.f32 %v112, %v343
  %v345 = vpop.f32.mrb[0].mxu0
  %v346 = vadd.f32 %v116, %v345
  %347 = vmatprep.mubr.f32.mxu0 0.0
  %348 = vmatmul.mubr.f32.gmra.mrb[0].mxu0 %v135
  %v349 = vpop.f32.mrb[0].mxu0
  %v350 = vadd.f32 %v112, %v349
  %v351 = vpop.f32.mrb[0].mxu0
  %v352 = vadd.f32 %v116, %v351
  %353 = vmatprep.mubr.f32.mxu0 0.0
  %354 = vmatmul.mubr.f32.gmra.mrb[0].mxu0 %v138
  %v355 = vpop.f32.mrb[0].mxu0
  %v356 = vadd.f32 %v112, %v355
  %v357 = vpop.f32.mrb[0].mxu0
  %v358 = vadd.f32 %v116, %v357
  %359 = vmatprep.mubr.f32.mxu0 0.0
  %360 = vmatmul.mubr.f32.gmra.mrb[0].mxu0 %v141
  %v361 = vpop.f32.mrb[0].mxu0
  %v362 = vadd.f32 %v112, %v361
  %v363 = vpop.f32.mrb[0].mxu0
  %v364 = vadd.f32 %v116, %v363
  %365 = vmatprep.mubr.f32.mxu0 0.0
  %366 = vmatmul.mubr.f32.gmra.mrb[0].mxu0 %v144
  %v367 = vpop.f32.mrb[0].mxu0
  %v368 = vadd.f32 %v112, %v367
  %v369 = vpop.f32.mrb[0].mxu0
  %v370 = vadd.f32 %v116, %v369
  %371 = vdwg.mxu0
  %372 = vst [vmem:[#allocation2] sm:$0xff] %v213
  %373 = vst [vmem:[#allocation2 + $0x8] sm:$0xff] %v215
  %374 = vst [vmem:[#allocation2 + $0x10] sm:$0xff] %v326
  %375 = vst [vmem:[#allocation2 + $0x18] sm:$0xff] %v328
  %s376 = scalar_lea.vmem [#allocation2], 32
  %377 = vst [vmem:[%s376] sm:$0xff] %v219
  %378 = vst [vmem:[%s376 + $0x8] sm:$0xff] %v221
  %379 = vst [vmem:[%s376 + $0x10] sm:$0xff] %v332
  %380 = vst [vmem:[%s376 + $0x18] sm:$0xff] %v334
  %s381 = scalar_lea.vmem [#allocation2], 64
  %382 = vst [vmem:[%s381] sm:$0xff] %v225
  %383 = vst [vmem:[%s381 + $0x8] sm:$0xff] %v227
  %384 = vst [vmem:[%s381 + $0x10] sm:$0xff] %v338
  %385 = vst [vmem:[%s381 + $0x18] sm:$0xff] %v340
  %s386 = scalar_lea.vmem [#allocation2], 96
  %387 = vst [vmem:[%s386] sm:$0xff] %v231
  %388 = vst [vmem:[%s386 + $0x8] sm:$0xff] %v233
  %389 = vst [vmem:[%s386 + $0x10] sm:$0xff] %v344
  %390 = vst [vmem:[%s386 + $0x18] sm:$0xff] %v346
  %s391 = scalar_lea.vmem [#allocation2], 128
  %392 = vst [vmem:[%s391] sm:$0xff] %v237
  %393 = vst [vmem:[%s391 + $0x8] sm:$0xff] %v239
  %394 = vst [vmem:[%s391 + $0x10] sm:$0xff] %v350
  %395 = vst [vmem:[%s391 + $0x18] sm:$0xff] %v352
  %s396 = scalar_lea.vmem [#allocation2], 160
  %397 = vst [vmem:[%s396] sm:$0xff] %v243
  %398 = vst [vmem:[%s396 + $0x8] sm:$0xff] %v245
  %399 = vst [vmem:[%s396 + $0x10] sm:$0xff] %v356
  %400 = vst [vmem:[%s396 + $0x18] sm:$0xff] %v358
  %s401 = scalar_lea.vmem [#allocation2], 192
  %402 = vst [vmem:[%s401] sm:$0xff] %v249
  %403 = vst [vmem:[%s401 + $0x8] sm:$0xff] %v251
  %404 = vst [vmem:[%s401 + $0x10] sm:$0xff] %v362
  %405 = vst [vmem:[%s401 + $0x18] sm:$0xff] %v364
  %s406 = scalar_lea.vmem [#allocation2], 224
  %407 = vst [vmem:[%s406] sm:$0xff] %v255
  %408 = vst [vmem:[%s406 + $0x8] sm:$0xff] %v257
  %409 = vst [vmem:[%s406 + $0x10] sm:$0xff] %v368
  %410 = vst [vmem:[%s406 + $0x18] sm:$0xff] %v370
  %s411 = smul.u32 8, 16
  %s412 = smul.u32 %s411, 4
  %s413 = sshll.u32 %s412, 4
  %414 = dma.done [#allocation4], %s413
  %v415 = vld [vmem:[#allocation3] sm:$0xff]
  %v416 = vld [vmem:[#allocation3 + $0x8] sm:$0xff]
  %v417 = vld [vmem:[#allocation3 + $0x10] sm:$0xff]
  %v418 = vld [vmem:[#allocation3 + $0x18] sm:$0xff]
  %v419 = vld [vmem:[#allocation3 + $0x20] sm:$0xff]
  %v420 = vld [vmem:[#allocation3 + $0x28] sm:$0xff]
  %v421 = vld [vmem:[#allocation3 + $0x30] sm:$0xff]
  %v422 = vld [vmem:[#allocation3 + $0x38] sm:$0xff]
  %v423 = vld [vmem:[#allocation3 + $0x40] sm:$0xff]
  %v424 = vld [vmem:[#allocation3 + $0x48] sm:$0xff]
  %v425 = vld [vmem:[#allocation3 + $0x50] sm:$0xff]
  %v426 = vld [vmem:[#allocation3 + $0x58] sm:$0xff]
  %v427 = vld [vmem:[#allocation3 + $0x60] sm:$0xff]
  %v428 = vld [vmem:[#allocation3 + $0x68] sm:$0xff]
  %v429 = vld [vmem:[#allocation3 + $0x70] sm:$0xff]
  %v430 = vld [vmem:[#allocation3 + $0x78] sm:$0xff]
  %v431 = vld [vmem:[#allocation3 + $0x80] sm:$0xff]
  %v432 = vld [vmem:[#allocation3 + $0x88] sm:$0xff]
  %v433 = vld [vmem:[#allocation3 + $0x90] sm:$0xff]
  %v434 = vld [vmem:[#allocation3 + $0x98] sm:$0xff]
  %v435 = vld [vmem:[#allocation3 + $0xa0] sm:$0xff]
  %v436 = vld [vmem:[#allocation3 + $0xa8] sm:$0xff]
  %v437 = vld [vmem:[#allocation3 + $0xb0] sm:$0xff]
  %v438 = vld [vmem:[#allocation3 + $0xb8] sm:$0xff]
  %v439 = vld [vmem:[#allocation3 + $0xc0] sm:$0xff]
  %v440 = vld [vmem:[#allocation3 + $0xc8] sm:$0xff]
  %v441 = vld [vmem:[#allocation3 + $0xd0] sm:$0xff]
  %v442 = vld [vmem:[#allocation3 + $0xd8] sm:$0xff]
  %v443 = vld [vmem:[#allocation3 + $0xe0] sm:$0xff]
  %v444 = vld [vmem:[#allocation3 + $0xe8] sm:$0xff]
  %v445 = vld [vmem:[#allocation3 + $0xf0] sm:$0xff]
  %v446 = vld [vmem:[#allocation3 + $0xf8] sm:$0xff]
  %v447 = vld [vmem:[#allocation3 + $0x100] sm:$0xff]
  %v448 = vld [vmem:[#allocation3 + $0x108] sm:$0xff]
  %v449 = vld [vmem:[#allocation3 + $0x110] sm:$0xff]
  %v450 = vld [vmem:[#allocation3 + $0x118] sm:$0xff]
  %v451 = vld [vmem:[#allocation3 + $0x120] sm:$0xff]
  %v452 = vld [vmem:[#allocation3 + $0x128] sm:$0xff]
  %v453 = vld [vmem:[#allocation3 + $0x130] sm:$0xff]
  %v454 = vld [vmem:[#allocation3 + $0x138] sm:$0xff]
  %v455 = vld [vmem:[#allocation3 + $0x140] sm:$0xff]
  %v456 = vld [vmem:[#allocation3 + $0x148] sm:$0xff]
  %v457 = vld [vmem:[#allocation3 + $0x150] sm:$0xff]
  %v458 = vld [vmem:[#allocation3 + $0x158] sm:$0xff]
  %v459 = vld [vmem:[#allocation3 + $0x160] sm:$0xff]
  %v460 = vld [vmem:[#allocation3 + $0x168] sm:$0xff]
  %v461 = vld [vmem:[#allocation3 + $0x170] sm:$0xff]
  %v462 = vld [vmem:[#allocation3 + $0x178] sm:$0xff]
  %v463 = vld [vmem:[#allocation3 + $0x180] sm:$0xff]
  %v464 = vld [vmem:[#allocation3 + $0x188] sm:$0xff]
  %v465 = vld [vmem:[#allocation3 + $0x190] sm:$0xff]
  %v466 = vld [vmem:[#allocation3 + $0x198] sm:$0xff]
  %v467 = vld [vmem:[#allocation3 + $0x1a0] sm:$0xff]
  %v468 = vld [vmem:[#allocation3 + $0x1a8] sm:$0xff]
  %v469 = vld [vmem:[#allocation3 + $0x1b0] sm:$0xff]
  %v470 = vld [vmem:[#allocation3 + $0x1b8] sm:$0xff]
  %v471 = vld [vmem:[#allocation3 + $0x1c0] sm:$0xff]
  %v472 = vld [vmem:[#allocation3 + $0x1c8] sm:$0xff]
  %v473 = vld [vmem:[#allocation3 + $0x1d0] sm:$0xff]
  %v474 = vld [vmem:[#allocation3 + $0x1d8] sm:$0xff]
  %v475 = vld [vmem:[#allocation3 + $0x1e0] sm:$0xff]
  %v476 = vld [vmem:[#allocation3 + $0x1e8] sm:$0xff]
  %v477 = vld [vmem:[#allocation3 + $0x1f0] sm:$0xff]
  %v478 = vld [vmem:[#allocation3 + $0x1f8] sm:$0xff]
  %v479 = vld [vmem:[%s1] sm:$0xff]
  %v480 = vadd.s32 %v479, 1
  %v481 = vld [vmem:[#allocation2] sm:$0xff]
  %v482 = vld [vmem:[#allocation2 + $0x8] sm:$0xff]
  %v483 = vld [vmem:[#allocation2 + $0x10] sm:$0xff]
  %v484 = vld [vmem:[#allocation2 + $0x18] sm:$0xff]
  %485 = vmatprep.subr.mxu0 %v416
  %486 = vmatpush1.msra.mxu0 %v415
  %487 = vmatprep.subr.mxu0 %v420
  %488 = vmatpush1.msra.mxu0 %v419
  %489 = vmatprep.subr.mxu0 %v424
  %490 = vmatpush1.msra.mxu0 %v423
  %491 = vmatprep.subr.mxu0 %v428
  %492 = vmatpush1.msra.mxu0 %v427
  %493 = vmatprep.subr.mxu0 %v432
  %494 = vmatpush1.msra.mxu0 %v431
  %495 = vmatprep.subr.mxu0 %v436
  %496 = vmatpush1.msra.mxu0 %v435
  %497 = vmatprep.subr.mxu0 %v440
  %498 = vmatpush1.msra.mxu0 %v439
  %499 = vmatprep.subr.mxu0 %v444
  %500 = vmatpush1.msra.mxu0 %v443
  %501 = vmatprep.subr.mxu0 %v448
  %502 = vmatpush1.msra.mxu0 %v447
  %503 = vmatprep.subr.mxu0 %v452
  %504 = vmatpush1.msra.mxu0 %v451
  %505 = vmatprep.subr.mxu0 %v456
  %506 = vmatpush1.msra.mxu0 %v455
  %507 = vmatprep.subr.mxu0 %v460
  %508 = vmatpush1.msra.mxu0 %v459
  %509 = vmatprep.subr.mxu0 %v464
  %510 = vmatpush1.msra.mxu0 %v463
  %511 = vmatprep.subr.mxu0 %v468
  %512 = vmatpush1.msra.mxu0 %v467
  %513 = vmatprep.subr.mxu0 %v472
  %514 = vmatpush1.msra.mxu0 %v471
  %515 = vmatprep.subr.mxu0 %v476
  %516 = vmatpush1.msra.mxu0 %v475
  %517 = vmatprep.subr.mxu0 0.0
  %518 = vmatpush1.msra.mxu0 0.0
  %519 = vmatprep.subr.mxu0 0.0
  %520 = vmatpush1.msra.mxu0 0.0
  %521 = vmatprep.subr.mxu0 0.0
  %522 = vmatpush1.msra.mxu0 0.0
  %523 = vmatprep.subr.mxu0 0.0
  %524 = vmatpush1.msra.mxu0 0.0
  %525 = vmatprep.subr.mxu0 0.0
  %526 = vmatpush1.msra.mxu0 0.0
  %527 = vmatprep.subr.mxu0 0.0
  %528 = vmatpush1.msra.mxu0 0.0
  %529 = vmatprep.subr.mxu0 0.0
  %530 = vmatpush1.msra.mxu0 0.0
  %531 = vmatprep.subr.mxu0 0.0
  %532 = vmatpush1.msra.mxu0 0.0
  %533 = vmatprep.subr.mxu0 0.0
  %534 = vmatpush1.msra.mxu0 0.0
  %535 = vmatprep.subr.mxu0 0.0
  %536 = vmatpush1.msra.mxu0 0.0
  %537 = vmatprep.subr.mxu0 0.0
  %538 = vmatpush1.msra.mxu0 0.0
  %539 = vmatprep.subr.mxu0 0.0
  %540 = vmatpush1.msra.mxu0 0.0
  %541 = vmatprep.subr.mxu0 0.0
  %542 = vmatpush1.msra.mxu0 0.0
  %543 = vmatprep.subr.mxu0 0.0
  %544 = vmatpush1.msra.mxu0 0.0
  %545 = vmatprep.subr.mxu0 0.0
  %546 = vmatpush1.msra.mxu0 0.0
  %547 = vmatprep.subr.mxu0 0.0
  %548 = vmatpush1.msra.mxu0 0.0
  %549 = vmatprep.mubr.f32.mxu0 0.0
  %550 = vmatmul.mubr.f32.gmra.mrb[0].mxu0 0.0
  %v551 = vpop.f32.mrb[0].mxu0
  %v552 = vadd.f32 0.0, %v551
  %v553 = vpop.f32.mrb[0].mxu0
  %v554 = vadd.f32 0.0, %v553
  %555 = vdwg.mxu0
  %556 = vmatprep.subr.mxu0 %v418
  %557 = vmatpush1.msra.mxu0 %v417
  %558 = vmatprep.subr.mxu0 %v422
  %559 = vmatpush1.msra.mxu0 %v421
  %560 = vmatprep.subr.mxu0 %v426
  %561 = vmatpush1.msra.mxu0 %v425
  %562 = vmatprep.subr.mxu0 %v430
  %563 = vmatpush1.msra.mxu0 %v429
  %564 = vmatprep.subr.mxu0 %v434
  %565 = vmatpush1.msra.mxu0 %v433
  %566 = vmatprep.subr.mxu0 %v438
  %567 = vmatpush1.msra.mxu0 %v437
  %568 = vmatprep.subr.mxu0 %v442
  %569 = vmatpush1.msra.mxu0 %v441
  %570 = vmatprep.subr.mxu0 %v446
  %571 = vmatpush1.msra.mxu0 %v445
  %572 = vmatprep.subr.mxu0 %v450
  %573 = vmatpush1.msra.mxu0 %v449
  %574 = vmatprep.subr.mxu0 %v454
  %575 = vmatpush1.msra.mxu0 %v453
  %576 = vmatprep.subr.mxu0 %v458
  %577 = vmatpush1.msra.mxu0 %v457
  %578 = vmatprep.subr.mxu0 %v462
  %579 = vmatpush1.msra.mxu0 %v461
  %580 = vmatprep.subr.mxu0 %v466
  %581 = vmatpush1.msra.mxu0 %v465
  %582 = vmatprep.subr.mxu0 %v470
  %583 = vmatpush1.msra.mxu0 %v469
  %584 = vmatprep.subr.mxu0 %v474
  %585 = vmatpush1.msra.mxu0 %v473
  %586 = vmatprep.subr.mxu0 %v478
  %587 = vmatpush1.msra.mxu0 %v477
  %588 = vmatprep.subr.mxu0 0.0
  %589 = vmatpush1.msra.mxu0 0.0
  %590 = vmatprep.subr.mxu0 0.0
  %591 = vmatpush1.msra.mxu0 0.0
  %592 = vmatprep.subr.mxu0 0.0
  %593 = vmatpush1.msra.mxu0 0.0
  %594 = vmatprep.subr.mxu0 0.0
  %595 = vmatpush1.msra.mxu0 0.0
  %596 = vmatprep.subr.mxu0 0.0
  %597 = vmatpush1.msra.mxu0 0.0
  %598 = vmatprep.subr.mxu0 0.0
  %599 = vmatpush1.msra.mxu0 0.0
  %600 = vmatprep.subr.mxu0 0.0
  %601 = vmatpush1.msra.mxu0 0.0
  %602 = vmatprep.subr.mxu0 0.0
  %603 = vmatpush1.msra.mxu0 0.0
  %604 = vmatprep.subr.mxu0 0.0
  %605 = vmatpush1.msra.mxu0 0.0
  %606 = vmatprep.subr.mxu0 0.0
  %607 = vmatpush1.msra.mxu0 0.0
  %608 = vmatprep.subr.mxu0 0.0
  %609 = vmatpush1.msra.mxu0 0.0
  %610 = vmatprep.subr.mxu0 0.0
  %611 = vmatpush1.msra.mxu0 0.0
  %612 = vmatprep.subr.mxu0 0.0
  %613 = vmatpush1.msra.mxu0 0.0
  %614 = vmatprep.subr.mxu0 0.0
  %615 = vmatpush1.msra.mxu0 0.0
  %616 = vmatprep.subr.mxu0 0.0
  %617 = vmatpush1.msra.mxu0 0.0
  %618 = vmatprep.subr.mxu0 0.0
  %619 = vmatpush1.msra.mxu0 0.0
  %620 = vmatprep.mubr.f32.mxu0 0.0
  %621 = vmatmul.mubr.f32.gmra.mrb[0].mxu0 0.0
  %v622 = vpop.f32.mrb[0].mxu0
  %v623 = vadd.f32 0.0, %v622
  %v624 = vpop.f32.mrb[0].mxu0
  %v625 = vadd.f32 0.0, %v624
  %626 = vdwg.mxu0
  %v627 = vadd.f32 %v481, %v552
  %v628 = vadd.f32 %v482, %v554
  %v629 = vadd.f32 %v483, %v623
  %v630 = vadd.f32 %v484, %v625
  %v631 = vxor.u32 %v627, 2147483648
  %v632 = vmul.f32 %v631, 1.442695
  %v633 = vpow.pop %v632
  %v634 = vadd.f32 %v633, 1.0
  %v635 = vrcp.pop %v634
  %v636 = vmul.f32 1.0, %v635
  %v637 = vxor.u32 %v628, 2147483648
  %v638 = vmul.f32 %v637, 1.442695
  %v639 = vpow.pop %v638
  %v640 = vadd.f32 %v639, 1.0
  %v641 = vrcp.pop %v640
  %v642 = vmul.f32 1.0, %v641
  %v643 = vtanh.pop %v629
  %v644 = vxor.u32 %v630, 2147483648
  %v645 = vmul.f32 %v644, 1.442695
  %v646 = vpow.pop %v645
  %v647 = vadd.f32 %v646, 1.0
  %v648 = vrcp.pop %v647
  %v649 = vmul.f32 1.0, %v648
  %v650 = vmul.f32 %v642, 0.0
  %v651 = vmul.f32 %v636, %v643
  %v652 = vadd.f32 %v650, %v651
  %v653 = vtanh.pop %v652
  %v654 = vmul.f32 %v649, %v653
  %vm655 = vcmp.eq.s32.totalorder %v480, 0
  %v656 = vsel %vm655, 1, 0
  %657 = vset.pattern.permute.xlu0 0
  %658 = vperm.xlu0 %657, %v656
  %v659 = vpop.permute.xlu0 %658
  %vm660 = vcmp.eq.s32.totalorder %v659, 1
  %v661 = vsel %vm660, %v654, 0.0
  %v662 = vld [vmem:[%s376] sm:$0xff]
  %v663 = vld [vmem:[%s376 + $0x8] sm:$0xff]
  %v664 = vld [vmem:[%s376 + $0x10] sm:$0xff]
  %v665 = vld [vmem:[%s376 + $0x18] sm:$0xff]
  %666 = vmatprep.subr.mxu0 %v416
  %667 = vmatpush1.msra.mxu0 %v415
  %668 = vmatprep.subr.mxu0 %v420
  %669 = vmatpush1.msra.mxu0 %v419
  %670 = vmatprep.subr.mxu0 %v424
  %671 = vmatpush1.msra.mxu0 %v423
  %672 = vmatprep.subr.mxu0 %v428
  %673 = vmatpush1.msra.mxu0 %v427
  %674 = vmatprep.subr.mxu0 %v432
  %675 = vmatpush1.msra.mxu0 %v431
  %676 = vmatprep.subr.mxu0 %v436
  %677 = vmatpush1.msra.mxu0 %v435
  %678 = vmatprep.subr.mxu0 %v440
  %679 = vmatpush1.msra.mxu0 %v439
  %680 = vmatprep.subr.mxu0 %v444
  %681 = vmatpush1.msra.mxu0 %v443
  %682 = vmatprep.subr.mxu0 %v448
  %683 = vmatpush1.msra.mxu0 %v447
  %684 = vmatprep.subr.mxu0 %v452
  %685 = vmatpush1.msra.mxu0 %v451
  %686 = vmatprep.subr.mxu0 %v456
  %687 = vmatpush1.msra.mxu0 %v455
  %688 = vmatprep.subr.mxu0 %v460
  %689 = vmatpush1.msra.mxu0 %v459
  %690 = vmatprep.subr.mxu0 %v464
  %691 = vmatpush1.msra.mxu0 %v463
  %692 = vmatprep.subr.mxu0 %v468
  %693 = vmatpush1.msra.mxu0 %v467
  %694 = vmatprep.subr.mxu0 %v472
  %695 = vmatpush1.msra.mxu0 %v471
  %696 = vmatprep.subr.mxu0 %v476
  %697 = vmatpush1.msra.mxu0 %v475
  %698 = vmatprep.subr.mxu0 0.0
  %699 = vmatpush1.msra.mxu0 0.0
  %700 = vmatprep.subr.mxu0 0.0
  %701 = vmatpush1.msra.mxu0 0.0
  %702 = vmatprep.subr.mxu0 0.0
  %703 = vmatpush1.msra.mxu0 0.0
  %704 = vmatprep.subr.mxu0 0.0
  %705 = vmatpush1.msra.mxu0 0.0
  %706 = vmatprep.subr.mxu0 0.0
  %707 = vmatpush1.msra.mxu0 0.0
  %708 = vmatprep.subr.mxu0 0.0
  %709 = vmatpush1.msra.mxu0 0.0
  %710 = vmatprep.subr.mxu0 0.0
  %711 = vmatpush1.msra.mxu0 0.0
  %712 = vmatprep.subr.mxu0 0.0
  %713 = vmatpush1.msra.mxu0 0.0
  %714 = vmatprep.subr.mxu0 0.0
  %715 = vmatpush1.msra.mxu0 0.0
  %716 = vmatprep.subr.mxu0 0.0
  %717 = vmatpush1.msra.mxu0 0.0
  %718 = vmatprep.subr.mxu0 0.0
  %719 = vmatpush1.msra.mxu0 0.0
  %720 = vmatprep.subr.mxu0 0.0
  %721 = vmatpush1.msra.mxu0 0.0
  %722 = vmatprep.subr.mxu0 0.0
  %723 = vmatpush1.msra.mxu0 0.0
  %724 = vmatprep.subr.mxu0 0.0
  %725 = vmatpush1.msra.mxu0 0.0
  %726 = vmatprep.subr.mxu0 0.0
  %727 = vmatpush1.msra.mxu0 0.0
  %728 = vmatprep.subr.mxu0 0.0
  %729 = vmatpush1.msra.mxu0 0.0
  %730 = vmatprep.mubr.f32.mxu0 0.0
  %731 = vmatmul.mubr.f32.gmra.mrb[0].mxu0 %v654
  %v732 = vpop.f32.mrb[0].mxu0
  %v733 = vadd.f32 0.0, %v732
  %v734 = vpop.f32.mrb[0].mxu0
  %v735 = vadd.f32 0.0, %v734
  %736 = vdwg.mxu0
  %737 = vmatprep.subr.mxu0 %v418
  %738 = vmatpush1.msra.mxu0 %v417
  %739 = vmatprep.subr.mxu0 %v422
  %740 = vmatpush1.msra.mxu0 %v421
  %741 = vmatprep.subr.mxu0 %v426
  %742 = vmatpush1.msra.mxu0 %v425
  %743 = vmatprep.subr.mxu0 %v430
  %744 = vmatpush1.msra.mxu0 %v429
  %745 = vmatprep.subr.mxu0 %v434
  %746 = vmatpush1.msra.mxu0 %v433
  %747 = vmatprep.subr.mxu0 %v438
  %748 = vmatpush1.msra.mxu0 %v437
  %749 = vmatprep.subr.mxu0 %v442
  %750 = vmatpush1.msra.mxu0 %v441
  %751 = vmatprep.subr.mxu0 %v446
  %752 = vmatpush1.msra.mxu0 %v445
  %753 = vmatprep.subr.mxu0 %v450
  %754 = vmatpush1.msra.mxu0 %v449
  %755 = vmatprep.subr.mxu0 %v454
  %756 = vmatpush1.msra.mxu0 %v453
  %757 = vmatprep.subr.mxu0 %v458
  %758 = vmatpush1.msra.mxu0 %v457
  %759 = vmatprep.subr.mxu0 %v462
  %760 = vmatpush1.msra.mxu0 %v461
  %761 = vmatprep.subr.mxu0 %v466
  %762 = vmatpush1.msra.mxu0 %v465
  %763 = vmatprep.subr.mxu0 %v470
  %764 = vmatpush1.msra.mxu0 %v469
  %765 = vmatprep.subr.mxu0 %v474
  %766 = vmatpush1.msra.mxu0 %v473
  %767 = vmatprep.subr.mxu0 %v478
  %768 = vmatpush1.msra.mxu0 %v477
  %769 = vmatprep.subr.mxu0 0.0
  %770 = vmatpush1.msra.mxu0 0.0
  %771 = vmatprep.subr.mxu0 0.0
  %772 = vmatpush1.msra.mxu0 0.0
  %773 = vmatprep.subr.mxu0 0.0
  %774 = vmatpush1.msra.mxu0 0.0
  %775 = vmatprep.subr.mxu0 0.0
  %776 = vmatpush1.msra.mxu0 0.0
  %777 = vmatprep.subr.mxu0 0.0
  %778 = vmatpush1.msra.mxu0 0.0
  %779 = vmatprep.subr.mxu0 0.0
  %780 = vmatpush1.msra.mxu0 0.0
  %781 = vmatprep.subr.mxu0 0.0
  %782 = vmatpush1.msra.mxu0 0.0
  %783 = vmatprep.subr.mxu0 0.0
  %784 = vmatpush1.msra.mxu0 0.0
  %785 = vmatprep.subr.mxu0 0.0
  %786 = vmatpush1.msra.mxu0 0.0
  %787 = vmatprep.subr.mxu0 0.0
  %788 = vmatpush1.msra.mxu0 0.0
  %789 = vmatprep.subr.mxu0 0.0
  %790 = vmatpush1.msra.mxu0 0.0
  %791 = vmatprep.subr.mxu0 0.0
  %792 = vmatpush1.msra.mxu0 0.0
  %793 = vmatprep.subr.mxu0 0.0
  %794 = vmatpush1.msra.mxu0 0.0
  %795 = vmatprep.subr.mxu0 0.0
  %796 = vmatpush1.msra.mxu0 0.0
  %797 = vmatprep.subr.mxu0 0.0
  %798 = vmatpush1.msra.mxu0 0.0
  %799 = vmatprep.subr.mxu0 0.0
  %800 = vmatpush1.msra.mxu0 0.0
  %801 = vmatprep.mubr.f32.mxu0 0.0
  %802 = vmatmul.mubr.f32.gmra.mrb[0].mxu0 %v654
  %v803 = vpop.f32.mrb[0].mxu0
  %v804 = vadd.f32 0.0, %v803
  %v805 = vpop.f32.mrb[0].mxu0
  %v806 = vadd.f32 0.0, %v805
  %807 = vdwg.mxu0
  %v808 = vadd.f32 %v662, %v733
  %v809 = vadd.f32 %v663, %v735
  %v810 = vadd.f32 %v664, %v804
  %v811 = vadd.f32 %v665, %v806
  %v812 = vxor.u32 %v808, 2147483648
  %v813 = vmul.f32 %v812, 1.442695
  %v814 = vpow.pop %v813
  %v815 = vadd.f32 %v814, 1.0
  %v816 = vrcp.pop %v815
  %v817 = vmul.f32 1.0, %v816
  %v818 = vxor.u32 %v809, 2147483648
  %v819 = vmul.f32 %v818, 1.442695
  %v820 = vpow.pop %v819
  %v821 = vadd.f32 %v820, 1.0
  %v822 = vrcp.pop %v821
  %v823 = vmul.f32 1.0, %v822
  %v824 = vtanh.pop %v810
  %v825 = vxor.u32 %v811, 2147483648
  %v826 = vmul.f32 %v825, 1.442695
  %v827 = vpow.pop %v826
  %v828 = vadd.f32 %v827, 1.0
  %v829 = vrcp.pop %v828
  %v830 = vmul.f32 1.0, %v829
  %v831 = vmul.f32 %v823, %v652
  %v832 = vmul.f32 %v817, %v824
  %v833 = vadd.f32 %v831, %v832
  %v834 = vtanh.pop %v833
  %v835 = vmul.f32 %v830, %v834
  %vm836 = vcmp.eq.s32.totalorder %v480, 1
  %v837 = vsel %vm836, 1, 0
  %838 = vset.pattern.permute.xlu0 0
  %839 = vperm.xlu0 %838, %v837
  %v840 = vpop.permute.xlu0 %839
  %vm841 = vcmp.eq.s32.totalorder %v840, 1
  %v842 = vsel %vm841, %v835, %v661
  %v843 = vld [vmem:[%s381] sm:$0xff]
  %v844 = vld [vmem:[%s381 + $0x8] sm:$0xff]
  %v845 = vld [vmem:[%s381 + $0x10] sm:$0xff]
  %v846 = vld [vmem:[%s381 + $0x18] sm:$0xff]
  %847 = vmatprep.subr.mxu0 %v416
  %848 = vmatpush1.msra.mxu0 %v415
  %849 = vmatprep.subr.mxu0 %v420
  %850 = vmatpush1.msra.mxu0 %v419
  %851 = vmatprep.subr.mxu0 %v424
  %852 = vmatpush1.msra.mxu0 %v423
  %853 = vmatprep.subr.mxu0 %v428
  %854 = vmatpush1.msra.mxu0 %v427
  %855 = vmatprep.subr.mxu0 %v432
  %856 = vmatpush1.msra.mxu0 %v431
  %857 = vmatprep.subr.mxu0 %v436
  %858 = vmatpush1.msra.mxu0 %v435
  %859 = vmatprep.subr.mxu0 %v440
  %860 = vmatpush1.msra.mxu0 %v439
  %861 = vmatprep.subr.mxu0 %v444
  %862 = vmatpush1.msra.mxu0 %v443
  %863 = vmatprep.subr.mxu0 %v448
  %864 = vmatpush1.msra.mxu0 %v447
  %865 = vmatprep.subr.mxu0 %v452
  %866 = vmatpush1.msra.mxu0 %v451
  %867 = vmatprep.subr.mxu0 %v456
  %868 = vmatpush1.msra.mxu0 %v455
  %869 = vmatprep.subr.mxu0 %v460
  %870 = vmatpush1.msra.mxu0 %v459
  %871 = vmatprep.subr.mxu0 %v464
  %872 = vmatpush1.msra.mxu0 %v463
  %873 = vmatprep.subr.mxu0 %v468
  %874 = vmatpush1.msra.mxu0 %v467
  %875 = vmatprep.subr.mxu0 %v472
  %876 = vmatpush1.msra.mxu0 %v471
  %877 = vmatprep.subr.mxu0 %v476
  %878 = vmatpush1.msra.mxu0 %v475
  %879 = vmatprep.subr.mxu0 0.0
  %880 = vmatpush1.msra.mxu0 0.0
  %881 = vmatprep.subr.mxu0 0.0
  %882 = vmatpush1.msra.mxu0 0.0
  %883 = vmatprep.subr.mxu0 0.0
  %884 = vmatpush1.msra.mxu0 0.0
  %885 = vmatprep.subr.mxu0 0.0
  %886 = vmatpush1.msra.mxu0 0.0
  %887 = vmatprep.subr.mxu0 0.0
  %888 = vmatpush1.msra.mxu0 0.0
  %889 = vmatprep.subr.mxu0 0.0
  %890 = vmatpush1.msra.mxu0 0.0
  %891 = vmatprep.subr.mxu0 0.0
  %892 = vmatpush1.msra.mxu0 0.0
  %893 = vmatprep.subr.mxu0 0.0
  %894 = vmatpush1.msra.mxu0 0.0
  %895 = vmatprep.subr.mxu0 0.0
  %896 = vmatpush1.msra.mxu0 0.0
  %897 = vmatprep.subr.mxu0 0.0
  %898 = vmatpush1.msra.mxu0 0.0
  %899 = vmatprep.subr.mxu0 0.0
  %900 = vmatpush1.msra.mxu0 0.0
  %901 = vmatprep.subr.mxu0 0.0
  %902 = vmatpush1.msra.mxu0 0.0
  %903 = vmatprep.subr.mxu0 0.0
  %904 = vmatpush1.msra.mxu0 0.0
  %905 = vmatprep.subr.mxu0 0.0
  %906 = vmatpush1.msra.mxu0 0.0
  %907 = vmatprep.subr.mxu0 0.0
  %908 = vmatpush1.msra.mxu0 0.0
  %909 = vmatprep.subr.mxu0 0.0
  %910 = vmatpush1.msra.mxu0 0.0
  %911 = vmatprep.mubr.f32.mxu0 0.0
  %912 = vmatmul.mubr.f32.gmra.mrb[0].mxu0 %v835
  %v913 = vpop.f32.mrb[0].mxu0
  %v914 = vadd.f32 0.0, %v913
  %v915 = vpop.f32.mrb[0].mxu0
  %v916 = vadd.f32 0.0, %v915
  %917 = vdwg.mxu0
  %918 = vmatprep.subr.mxu0 %v418
  %919 = vmatpush1.msra.mxu0 %v417
  %920 = vmatprep.subr.mxu0 %v422
  %921 = vmatpush1.msra.mxu0 %v421
  %922 = vmatprep.subr.mxu0 %v426
  %923 = vmatpush1.msra.mxu0 %v425
  %924 = vmatprep.subr.mxu0 %v430
  %925 = vmatpush1.msra.mxu0 %v429
  %926 = vmatprep.subr.mxu0 %v434
  %927 = vmatpush1.msra.mxu0 %v433
  %928 = vmatprep.subr.mxu0 %v438
  %929 = vmatpush1.msra.mxu0 %v437
  %930 = vmatprep.subr.mxu0 %v442
  %931 = vmatpush1.msra.mxu0 %v441
  %932 = vmatprep.subr.mxu0 %v446
  %933 = vmatpush1.msra.mxu0 %v445
  %934 = vmatprep.subr.mxu0 %v450
  %935 = vmatpush1.msra.mxu0 %v449
  %936 = vmatprep.subr.mxu0 %v454
  %937 = vmatpush1.msra.mxu0 %v453
  %938 = vmatprep.subr.mxu0 %v458
  %939 = vmatpush1.msra.mxu0 %v457
  %940 = vmatprep.subr.mxu0 %v462
  %941 = vmatpush1.msra.mxu0 %v461
  %942 = vmatprep.subr.mxu0 %v466
  %943 = vmatpush1.msra.mxu0 %v465
  %944 = vmatprep.subr.mxu0 %v470
  %945 = vmatpush1.msra.mxu0 %v469
  %946 = vmatprep.subr.mxu0 %v474
  %947 = vmatpush1.msra.mxu0 %v473
  %948 = vmatprep.subr.mxu0 %v478
  %949 = vmatpush1.msra.mxu0 %v477
  %950 = vmatprep.subr.mxu0 0.0
  %951 = vmatpush1.msra.mxu0 0.0
  %952 = vmatprep.subr.mxu0 0.0
  %953 = vmatpush1.msra.mxu0 0.0
  %954 = vmatprep.subr.mxu0 0.0
  %955 = vmatpush1.msra.mxu0 0.0
  %956 = vmatprep.subr.mxu0 0.0
  %957 = vmatpush1.msra.mxu0 0.0
  %958 = vmatprep.subr.mxu0 0.0
  %959 = vmatpush1.msra.mxu0 0.0
  %960 = vmatprep.subr.mxu0 0.0
  %961 = vmatpush1.msra.mxu0 0.0
  %962 = vmatprep.subr.mxu0 0.0
  %963 = vmatpush1.msra.mxu0 0.0
  %964 = vmatprep.subr.mxu0 0.0
  %965 = vmatpush1.msra.mxu0 0.0
  %966 = vmatprep.subr.mxu0 0.0
  %967 = vmatpush1.msra.mxu0 0.0
  %968 = vmatprep.subr.mxu0 0.0
  %969 = vmatpush1.msra.mxu0 0.0
  %970 = vmatprep.subr.mxu0 0.0
  %971 = vmatpush1.msra.mxu0 0.0
  %972 = vmatprep.subr.mxu0 0.0
  %973 = vmatpush1.msra.mxu0 0.0
  %974 = vmatprep.subr.mxu0 0.0
  %975 = vmatpush1.msra.mxu0 0.0
  %976 = vmatprep.subr.mxu0 0.0
  %977 = vmatpush1.msra.mxu0 0.0
  %978 = vmatprep.subr.mxu0 0.0
  %979 = vmatpush1.msra.mxu0 0.0
  %980 = vmatprep.subr.mxu0 0.0
  %981 = vmatpush1.msra.mxu0 0.0
  %982 = vmatprep.mubr.f32.mxu0 0.0
  %983 = vmatmul.mubr.f32.gmra.mrb[0].mxu0 %v835
  %v984 = vpop.f32.mrb[0].mxu0
  %v985 = vadd.f32 0.0, %v984
  %v986 = vpop.f32.mrb[0].mxu0
  %v987 = vadd.f32 0.0, %v986
  %988 = vdwg.mxu0
  %v989 = vadd.f32 %v843, %v914
  %v990 = vadd.f32 %v844, %v916
  %v991 = vadd.f32 %v845, %v985
  %v992 = vadd.f32 %v846, %v987
  %v993 = vxor.u32 %v989, 2147483648
  %v994 = vmul.f32 %v993, 1.442695
  %v995 = vpow.pop %v994
  %v996 = vadd.f32 %v995, 1.0
  %v997 = vrcp.pop %v996
  %v998 = vmul.f32 1.0, %v997
  %v999 = vxor.u32 %v990, 2147483648
  %v1000 = vmul.f32 %v999, 1.442695
  %v1001 = vpow.pop %v1000
  %v1002 = vadd.f32 %v1001, 1.0
  %v1003 = vrcp.pop %v1002
  %v1004 = vmul.f32 1.0, %v1003
  %v1005 = vtanh.pop %v991
  %v1006 = vxor.u32 %v992, 2147483648
  %v1007 = vmul.f32 %v1006, 1.442695
  %v1008 = vpow.pop %v1007
  %v1009 = vadd.f32 %v1008, 1.0
  %v1010 = vrcp.pop %v1009
  %v1011 = vmul.f32 1.0, %v1010
  %v1012 = vmul.f32 %v1004, %v833
  %v1013 = vmul.f32 %v998, %v1005
  %v1014 = vadd.f32 %v1012, %v1013
  %v1015 = vtanh.pop %v1014
  %v1016 = vmul.f32 %v1011, %v1015
  %vm1017 = vcmp.eq.s32.totalorder %v480, 2
  %v1018 = vsel %vm1017, 1, 0
  %1019 = vset.pattern.permute.xlu0 0
  %1020 = vperm.xlu0 %1019, %v1018
  %v1021 = vpop.permute.xlu0 %1020
  %vm1022 = vcmp.eq.s32.totalorder %v1021, 1
  %v1023 = vsel %vm1022, %v1016, %v842
  %v1024 = vld [vmem:[%s386] sm:$0xff]
  %v1025 = vld [vmem:[%s386 + $0x8] sm:$0xff]
  %v1026 = vld [vmem:[%s386 + $0x10] sm:$0xff]
  %v1027 = vld [vmem:[%s386 + $0x18] sm:$0xff]
  %1028 = vmatprep.subr.mxu0 %v416
  %1029 = vmatpush1.msra.mxu0 %v415
  %1030 = vmatprep.subr.mxu0 %v420
  %1031 = vmatpush1.msra.mxu0 %v419
  %1032 = vmatprep.subr.mxu0 %v424
  %1033 = vmatpush1.msra.mxu0 %v423
  %1034 = vmatprep.subr.mxu0 %v428
  %1035 = vmatpush1.msra.mxu0 %v427
  %1036 = vmatprep.subr.mxu0 %v432
  %1037 = vmatpush1.msra.mxu0 %v431
  %1038 = vmatprep.subr.mxu0 %v436
  %1039 = vmatpush1.msra.mxu0 %v435
  %1040 = vmatprep.subr.mxu0 %v440
  %1041 = vmatpush1.msra.mxu0 %v439
  %1042 = vmatprep.subr.mxu0 %v444
  %1043 = vmatpush1.msra.mxu0 %v443
  %1044 = vmatprep.subr.mxu0 %v448
  %1045 = vmatpush1.msra.mxu0 %v447
  %1046 = vmatprep.subr.mxu0 %v452
  %1047 = vmatpush1.msra.mxu0 %v451
  %1048 = vmatprep.subr.mxu0 %v456
  %1049 = vmatpush1.msra.mxu0 %v455
  %1050 = vmatprep.subr.mxu0 %v460
  %1051 = vmatpush1.msra.mxu0 %v459
  %1052 = vmatprep.subr.mxu0 %v464
  %1053 = vmatpush1.msra.mxu0 %v463
  %1054 = vmatprep.subr.mxu0 %v468
  %1055 = vmatpush1.msra.mxu0 %v467
  %1056 = vmatprep.subr.mxu0 %v472
  %1057 = vmatpush1.msra.mxu0 %v471
  %1058 = vmatprep.subr.mxu0 %v476
  %1059 = vmatpush1.msra.mxu0 %v475
  %1060 = vmatprep.subr.mxu0 0.0
  %1061 = vmatpush1.msra.mxu0 0.0
  %1062 = vmatprep.subr.mxu0 0.0
  %1063 = vmatpush1.msra.mxu0 0.0
  %1064 = vmatprep.subr.mxu0 0.0
  %1065 = vmatpush1.msra.mxu0 0.0
  %1066 = vmatprep.subr.mxu0 0.0
  %1067 = vmatpush1.msra.mxu0 0.0
  %1068 = vmatprep.subr.mxu0 0.0
  %1069 = vmatpush1.msra.mxu0 0.0
  %1070 = vmatprep.subr.mxu0 0.0
  %1071 = vmatpush1.msra.mxu0 0.0
  %1072 = vmatprep.subr.mxu0 0.0
  %1073 = vmatpush1.msra.mxu0 0.0
  %1074 = vmatprep.subr.mxu0 0.0
  %1075 = vmatpush1.msra.mxu0 0.0
  %1076 = vmatprep.subr.mxu0 0.0
  %1077 = vmatpush1.msra.mxu0 0.0
  %1078 = vmatprep.subr.mxu0 0.0
  %1079 = vmatpush1.msra.mxu0 0.0
  %1080 = vmatprep.subr.mxu0 0.0
  %1081 = vmatpush1.msra.mxu0 0.0
  %1082 = vmatprep.subr.mxu0 0.0
  %1083 = vmatpush1.msra.mxu0 0.0
  %1084 = vmatprep.subr.mxu0 0.0
  %1085 = vmatpush1.msra.mxu0 0.0
  %1086 = vmatprep.subr.mxu0 0.0
  %1087 = vmatpush1.msra.mxu0 0.0
  %1088 = vmatprep.subr.mxu0 0.0
  %1089 = vmatpush1.msra.mxu0 0.0
  %1090 = vmatprep.subr.mxu0 0.0
  %1091 = vmatpush1.msra.mxu0 0.0
  %1092 = vmatprep.mubr.f32.mxu0 0.0
  %1093 = vmatmul.mubr.f32.gmra.mrb[0].mxu0 %v1016
  %v1094 = vpop.f32.mrb[0].mxu0
  %v1095 = vadd.f32 0.0, %v1094
  %v1096 = vpop.f32.mrb[0].mxu0
  %v1097 = vadd.f32 0.0, %v1096
  %1098 = vdwg.mxu0
  %1099 = vmatprep.subr.mxu0 %v418
  %1100 = vmatpush1.msra.mxu0 %v417
  %1101 = vmatprep.subr.mxu0 %v422
  %1102 = vmatpush1.msra.mxu0 %v421
  %1103 = vmatprep.subr.mxu0 %v426
  %1104 = vmatpush1.msra.mxu0 %v425
  %1105 = vmatprep.subr.mxu0 %v430
  %1106 = vmatpush1.msra.mxu0 %v429
  %1107 = vmatprep.subr.mxu0 %v434
  %1108 = vmatpush1.msra.mxu0 %v433
  %1109 = vmatprep.subr.mxu0 %v438
  %1110 = vmatpush1.msra.mxu0 %v437
  %1111 = vmatprep.subr.mxu0 %v442
  %1112 = vmatpush1.msra.mxu0 %v441
  %1113 = vmatprep.subr.mxu0 %v446
  %1114 = vmatpush1.msra.mxu0 %v445
  %1115 = vmatprep.subr.mxu0 %v450
  %1116 = vmatpush1.msra.mxu0 %v449
  %1117 = vmatprep.subr.mxu0 %v454
  %1118 = vmatpush1.msra.mxu0 %v453
  %1119 = vmatprep.subr.mxu0 %v458
  %1120 = vmatpush1.msra.mxu0 %v457
  %1121 = vmatprep.subr.mxu0 %v462
  %1122 = vmatpush1.msra.mxu0 %v461
  %1123 = vmatprep.subr.mxu0 %v466
  %1124 = vmatpush1.msra.mxu0 %v465
  %1125 = vmatprep.subr.mxu0 %v470
  %1126 = vmatpush1.msra.mxu0 %v469
  %1127 = vmatprep.subr.mxu0 %v474
  %1128 = vmatpush1.msra.mxu0 %v473
  %1129 = vmatprep.subr.mxu0 %v478
  %1130 = vmatpush1.msra.mxu0 %v477
  %1131 = vmatprep.subr.mxu0 0.0
  %1132 = vmatpush1.msra.mxu0 0.0
  %1133 = vmatprep.subr.mxu0 0.0
  %1134 = vmatpush1.msra.mxu0 0.0
  %1135 = vmatprep.subr.mxu0 0.0
  %1136 = vmatpush1.msra.mxu0 0.0
  %1137 = vmatprep.subr.mxu0 0.0
  %1138 = vmatpush1.msra.mxu0 0.0
  %1139 = vmatprep.subr.mxu0 0.0
  %1140 = vmatpush1.msra.mxu0 0.0
  %1141 = vmatprep.subr.mxu0 0.0
  %1142 = vmatpush1.msra.mxu0 0.0
  %1143 = vmatprep.subr.mxu0 0.0
  %1144 = vmatpush1.msra.mxu0 0.0
  %1145 = vmatprep.subr.mxu0 0.0
  %1146 = vmatpush1.msra.mxu0 0.0
  %1147 = vmatprep.subr.mxu0 0.0
  %1148 = vmatpush1.msra.mxu0 0.0
  %1149 = vmatprep.subr.mxu0 0.0
  %1150 = vmatpush1.msra.mxu0 0.0
  %1151 = vmatprep.subr.mxu0 0.0
  %1152 = vmatpush1.msra.mxu0 0.0
  %1153 = vmatprep.subr.mxu0 0.0
  %1154 = vmatpush1.msra.mxu0 0.0
  %1155 = vmatprep.subr.mxu0 0.0
  %1156 = vmatpush1.msra.mxu0 0.0
  %1157 = vmatprep.subr.mxu0 0.0
  %1158 = vmatpush1.msra.mxu0 0.0
  %1159 = vmatprep.subr.mxu0 0.0
  %1160 = vmatpush1.msra.mxu0 0.0
  %1161 = vmatprep.subr.mxu0 0.0
  %1162 = vmatpush1.msra.mxu0 0.0
  %1163 = vmatprep.mubr.f32.mxu0 0.0
  %1164 = vmatmul.mubr.f32.gmra.mrb[0].mxu0 %v1016
  %v1165 = vpop.f32.mrb[0].mxu0
  %v1166 = vadd.f32 0.0, %v1165
  %v1167 = vpop.f32.mrb[0].mxu0
  %v1168 = vadd.f32 0.0, %v1167
  %1169 = vdwg.mxu0
  %v1170 = vadd.f32 %v1024, %v1095
  %v1171 = vadd.f32 %v1025, %v1097
  %v1172 = vadd.f32 %v1026, %v1166
  %v1173 = vadd.f32 %v1027, %v1168
  %v1174 = vxor.u32 %v1170, 2147483648
  %v1175 = vmul.f32 %v1174, 1.442695
  %v1176 = vpow.pop %v1175
  %v1177 = vadd.f32 %v1176, 1.0
  %v1178 = vrcp.pop %v1177
  %v1179 = vmul.f32 1.0, %v1178
  %v1180 = vxor.u32 %v1171, 2147483648
  %v1181 = vmul.f32 %v1180, 1.442695
  %v1182 = vpow.pop %v1181
  %v1183 = vadd.f32 %v1182, 1.0
  %v1184 = vrcp.pop %v1183
  %v1185 = vmul.f32 1.0, %v1184
  %v1186 = vtanh.pop %v1172
  %v1187 = vxor.u32 %v1173, 2147483648
  %v1188 = vmul.f32 %v1187, 1.442695
  %v1189 = vpow.pop %v1188
  %v1190 = vadd.f32 %v1189, 1.0
  %v1191 = vrcp.pop %v1190
  %v1192 = vmul.f32 1.0, %v1191
  %v1193 = vmul.f32 %v1185, %v1014
  %v1194 = vmul.f32 %v1179, %v1186
  %v1195 = vadd.f32 %v1193, %v1194
  %v1196 = vtanh.pop %v1195
  %v1197 = vmul.f32 %v1192, %v1196
  %vm1198 = vcmp.eq.s32.totalorder %v480, 3
  %v1199 = vsel %vm1198, 1, 0
  %1200 = vset.pattern.permute.xlu0 0
  %1201 = vperm.xlu0 %1200, %v1199
  %v1202 = vpop.permute.xlu0 %1201
  %vm1203 = vcmp.eq.s32.totalorder %v1202, 1
  %v1204 = vsel %vm1203, %v1197, %v1023
  %v1205 = vld [vmem:[%s391] sm:$0xff]
  %v1206 = vld [vmem:[%s391 + $0x8] sm:$0xff]
  %v1207 = vld [vmem:[%s391 + $0x10] sm:$0xff]
  %v1208 = vld [vmem:[%s391 + $0x18] sm:$0xff]
  %1209 = vmatprep.subr.mxu0 %v416
  %1210 = vmatpush1.msra.mxu0 %v415
  %1211 = vmatprep.subr.mxu0 %v420
  %1212 = vmatpush1.msra.mxu0 %v419
  %1213 = vmatprep.subr.mxu0 %v424
  %1214 = vmatpush1.msra.mxu0 %v423
  %1215 = vmatprep.subr.mxu0 %v428
  %1216 = vmatpush1.msra.mxu0 %v427
  %1217 = vmatprep.subr.mxu0 %v432
  %1218 = vmatpush1.msra.mxu0 %v431
  %1219 = vmatprep.subr.mxu0 %v436
  %1220 = vmatpush1.msra.mxu0 %v435
  %1221 = vmatprep.subr.mxu0 %v440
  %1222 = vmatpush1.msra.mxu0 %v439
  %1223 = vmatprep.subr.mxu0 %v444
  %1224 = vmatpush1.msra.mxu0 %v443
  %1225 = vmatprep.subr.mxu0 %v448
  %1226 = vmatpush1.msra.mxu0 %v447
  %1227 = vmatprep.subr.mxu0 %v452
  %1228 = vmatpush1.msra.mxu0 %v451
  %1229 = vmatprep.subr.mxu0 %v456
  %1230 = vmatpush1.msra.mxu0 %v455
  %1231 = vmatprep.subr.mxu0 %v460
  %1232 = vmatpush1.msra.mxu0 %v459
  %1233 = vmatprep.subr.mxu0 %v464
  %1234 = vmatpush1.msra.mxu0 %v463
  %1235 = vmatprep.subr.mxu0 %v468
  %1236 = vmatpush1.msra.mxu0 %v467
  %1237 = vmatprep.subr.mxu0 %v472
  %1238 = vmatpush1.msra.mxu0 %v471
  %1239 = vmatprep.subr.mxu0 %v476
  %1240 = vmatpush1.msra.mxu0 %v475
  %1241 = vmatprep.subr.mxu0 0.0
  %1242 = vmatpush1.msra.mxu0 0.0
  %1243 = vmatprep.subr.mxu0 0.0
  %1244 = vmatpush1.msra.mxu0 0.0
  %1245 = vmatprep.subr.mxu0 0.0
  %1246 = vmatpush1.msra.mxu0 0.0
  %1247 = vmatprep.subr.mxu0 0.0
  %1248 = vmatpush1.msra.mxu0 0.0
  %1249 = vmatprep.subr.mxu0 0.0
  %1250 = vmatpush1.msra.mxu0 0.0
  %1251 = vmatprep.subr.mxu0 0.0
  %1252 = vmatpush1.msra.mxu0 0.0
  %1253 = vmatprep.subr.mxu0 0.0
  %1254 = vmatpush1.msra.mxu0 0.0
  %1255 = vmatprep.subr.mxu0 0.0
  %1256 = vmatpush1.msra.mxu0 0.0
  %1257 = vmatprep.subr.mxu0 0.0
  %1258 = vmatpush1.msra.mxu0 0.0
  %1259 = vmatprep.subr.mxu0 0.0
  %1260 = vmatpush1.msra.mxu0 0.0
  %1261 = vmatprep.subr.mxu0 0.0
  %1262 = vmatpush1.msra.mxu0 0.0
  %1263 = vmatprep.subr.mxu0 0.0
  %1264 = vmatpush1.msra.mxu0 0.0
  %1265 = vmatprep.subr.mxu0 0.0
  %1266 = vmatpush1.msra.mxu0 0.0
  %1267 = vmatprep.subr.mxu0 0.0
  %1268 = vmatpush1.msra.mxu0 0.0
  %1269 = vmatprep.subr.mxu0 0.0
  %1270 = vmatpush1.msra.mxu0 0.0
  %1271 = vmatprep.subr.mxu0 0.0
  %1272 = vmatpush1.msra.mxu0 0.0
  %1273 = vmatprep.mubr.f32.mxu0 0.0
  %1274 = vmatmul.mubr.f32.gmra.mrb[0].mxu0 %v1197
  %v1275 = vpop.f32.mrb[0].mxu0
  %v1276 = vadd.f32 0.0, %v1275
  %v1277 = vpop.f32.mrb[0].mxu0
  %v1278 = vadd.f32 0.0, %v1277
  %1279 = vdwg.mxu0
  %1280 = vmatprep.subr.mxu0 %v418
  %1281 = vmatpush1.msra.mxu0 %v417
  %1282 = vmatprep.subr.mxu0 %v422
  %1283 = vmatpush1.msra.mxu0 %v421
  %1284 = vmatprep.subr.mxu0 %v426
  %1285 = vmatpush1.msra.mxu0 %v425
  %1286 = vmatprep.subr.mxu0 %v430
  %1287 = vmatpush1.msra.mxu0 %v429
  %1288 = vmatprep.subr.mxu0 %v434
  %1289 = vmatpush1.msra.mxu0 %v433
  %1290 = vmatprep.subr.mxu0 %v438
  %1291 = vmatpush1.msra.mxu0 %v437
  %1292 = vmatprep.subr.mxu0 %v442
  %1293 = vmatpush1.msra.mxu0 %v441
  %1294 = vmatprep.subr.mxu0 %v446
  %1295 = vmatpush1.msra.mxu0 %v445
  %1296 = vmatprep.subr.mxu0 %v450
  %1297 = vmatpush1.msra.mxu0 %v449
  %1298 = vmatprep.subr.mxu0 %v454
  %1299 = vmatpush1.msra.mxu0 %v453
  %1300 = vmatprep.subr.mxu0 %v458
  %1301 = vmatpush1.msra.mxu0 %v457
  %1302 = vmatprep.subr.mxu0 %v462
  %1303 = vmatpush1.msra.mxu0 %v461
  %1304 = vmatprep.subr.mxu0 %v466
  %1305 = vmatpush1.msra.mxu0 %v465
  %1306 = vmatprep.subr.mxu0 %v470
  %1307 = vmatpush1.msra.mxu0 %v469
  %1308 = vmatprep.subr.mxu0 %v474
  %1309 = vmatpush1.msra.mxu0 %v473
  %1310 = vmatprep.subr.mxu0 %v478
  %1311 = vmatpush1.msra.mxu0 %v477
  %1312 = vmatprep.subr.mxu0 0.0
  %1313 = vmatpush1.msra.mxu0 0.0
  %1314 = vmatprep.subr.mxu0 0.0
  %1315 = vmatpush1.msra.mxu0 0.0
  %1316 = vmatprep.subr.mxu0 0.0
  %1317 = vmatpush1.msra.mxu0 0.0
  %1318 = vmatprep.subr.mxu0 0.0
  %1319 = vmatpush1.msra.mxu0 0.0
  %1320 = vmatprep.subr.mxu0 0.0
  %1321 = vmatpush1.msra.mxu0 0.0
  %1322 = vmatprep.subr.mxu0 0.0
  %1323 = vmatpush1.msra.mxu0 0.0
  %1324 = vmatprep.subr.mxu0 0.0
  %1325 = vmatpush1.msra.mxu0 0.0
  %1326 = vmatprep.subr.mxu0 0.0
  %1327 = vmatpush1.msra.mxu0 0.0
  %1328 = vmatprep.subr.mxu0 0.0
  %1329 = vmatpush1.msra.mxu0 0.0
  %1330 = vmatprep.subr.mxu0 0.0
  %1331 = vmatpush1.msra.mxu0 0.0
  %1332 = vmatprep.subr.mxu0 0.0
  %1333 = vmatpush1.msra.mxu0 0.0
  %1334 = vmatprep.subr.mxu0 0.0
  %1335 = vmatpush1.msra.mxu0 0.0
  %1336 = vmatprep.subr.mxu0 0.0
  %1337 = vmatpush1.msra.mxu0 0.0
  %1338 = vmatprep.subr.mxu0 0.0
  %1339 = vmatpush1.msra.mxu0 0.0
  %1340 = vmatprep.subr.mxu0 0.0
  %1341 = vmatpush1.msra.mxu0 0.0
  %1342 = vmatprep.subr.mxu0 0.0
  %1343 = vmatpush1.msra.mxu0 0.0
  %1344 = vmatprep.mubr.f32.mxu0 0.0
  %1345 = vmatmul.mubr.f32.gmra.mrb[0].mxu0 %v1197
  %v1346 = vpop.f32.mrb[0].mxu0
  %v1347 = vadd.f32 0.0, %v1346
  %v1348 = vpop.f32.mrb[0].mxu0
  %v1349 = vadd.f32 0.0, %v1348
  %1350 = vdwg.mxu0
  %v1351 = vadd.f32 %v1205, %v1276
  %v1352 = vadd.f32 %v1206, %v1278
  %v1353 = vadd.f32 %v1207, %v1347
  %v1354 = vadd.f32 %v1208, %v1349
  %v1355 = vxor.u32 %v1351, 2147483648
  %v1356 = vmul.f32 %v1355, 1.442695
  %v1357 = vpow.pop %v1356
  %v1358 = vadd.f32 %v1357, 1.0
  %v1359 = vrcp.pop %v1358
  %v1360 = vmul.f32 1.0, %v1359
  %v1361 = vxor.u32 %v1352, 2147483648
  %v1362 = vmul.f32 %v1361, 1.442695
  %v1363 = vpow.pop %v1362
  %v1364 = vadd.f32 %v1363, 1.0
  %v1365 = vrcp.pop %v1364
  %v1366 = vmul.f32 1.0, %v1365
  %v1367 = vtanh.pop %v1353
  %v1368 = vxor.u32 %v1354, 2147483648
  %v1369 = vmul.f32 %v1368, 1.442695
  %v1370 = vpow.pop %v1369
  %v1371 = vadd.f32 %v1370, 1.0
  %v1372 = vrcp.pop %v1371
  %v1373 = vmul.f32 1.0, %v1372
  %v1374 = vmul.f32 %v1366, %v1195
  %v1375 = vmul.f32 %v1360, %v1367
  %v1376 = vadd.f32 %v1374, %v1375
  %v1377 = vtanh.pop %v1376
  %v1378 = vmul.f32 %v1373, %v1377
  %vm1379 = vcmp.eq.s32.totalorder %v480, 4
  %v1380 = vsel %vm1379, 1, 0
  %1381 = vset.pattern.permute.xlu0 0
  %1382 = vperm.xlu0 %1381, %v1380
  %v1383 = vpop.permute.xlu0 %1382
  %vm1384 = vcmp.eq.s32.totalorder %v1383, 1
  %v1385 = vsel %vm1384, %v1378, %v1204
  %v1386 = vld [vmem:[%s396] sm:$0xff]
  %v1387 = vld [vmem:[%s396 + $0x8] sm:$0xff]
  %v1388 = vld [vmem:[%s396 + $0x10] sm:$0xff]
  %v1389 = vld [vmem:[%s396 + $0x18] sm:$0xff]
  %1390 = vmatprep.subr.mxu0 %v416
  %1391 = vmatpush1.msra.mxu0 %v415
  %1392 = vmatprep.subr.mxu0 %v420
  %1393 = vmatpush1.msra.mxu0 %v419
  %1394 = vmatprep.subr.mxu0 %v424
  %1395 = vmatpush1.msra.mxu0 %v423
  %1396 = vmatprep.subr.mxu0 %v428
  %1397 = vmatpush1.msra.mxu0 %v427
  %1398 = vmatprep.subr.mxu0 %v432
  %1399 = vmatpush1.msra.mxu0 %v431
  %1400 = vmatprep.subr.mxu0 %v436
  %1401 = vmatpush1.msra.mxu0 %v435
  %1402 = vmatprep.subr.mxu0 %v440
  %1403 = vmatpush1.msra.mxu0 %v439
  %1404 = vmatprep.subr.mxu0 %v444
  %1405 = vmatpush1.msra.mxu0 %v443
  %1406 = vmatprep.subr.mxu0 %v448
  %1407 = vmatpush1.msra.mxu0 %v447
  %1408 = vmatprep.subr.mxu0 %v452
  %1409 = vmatpush1.msra.mxu0 %v451
  %1410 = vmatprep.subr.mxu0 %v456
  %1411 = vmatpush1.msra.mxu0 %v455
  %1412 = vmatprep.subr.mxu0 %v460
  %1413 = vmatpush1.msra.mxu0 %v459
  %1414 = vmatprep.subr.mxu0 %v464
  %1415 = vmatpush1.msra.mxu0 %v463
  %1416 = vmatprep.subr.mxu0 %v468
  %1417 = vmatpush1.msra.mxu0 %v467
  %1418 = vmatprep.subr.mxu0 %v472
  %1419 = vmatpush1.msra.mxu0 %v471
  %1420 = vmatprep.subr.mxu0 %v476
  %1421 = vmatpush1.msra.mxu0 %v475
  %1422 = vmatprep.subr.mxu0 0.0
  %1423 = vmatpush1.msra.mxu0 0.0
  %1424 = vmatprep.subr.mxu0 0.0
  %1425 = vmatpush1.msra.mxu0 0.0
  %1426 = vmatprep.subr.mxu0 0.0
  %1427 = vmatpush1.msra.mxu0 0.0
  %1428 = vmatprep.subr.mxu0 0.0
  %1429 = vmatpush1.msra.mxu0 0.0
  %1430 = vmatprep.subr.mxu0 0.0
  %1431 = vmatpush1.msra.mxu0 0.0
  %1432 = vmatprep.subr.mxu0 0.0
  %1433 = vmatpush1.msra.mxu0 0.0
  %1434 = vmatprep.subr.mxu0 0.0
  %1435 = vmatpush1.msra.mxu0 0.0
  %1436 = vmatprep.subr.mxu0 0.0
  %1437 = vmatpush1.msra.mxu0 0.0
  %1438 = vmatprep.subr.mxu0 0.0
  %1439 = vmatpush1.msra.mxu0 0.0
  %1440 = vmatprep.subr.mxu0 0.0
  %1441 = vmatpush1.msra.mxu0 0.0
  %1442 = vmatprep.subr.mxu0 0.0
  %1443 = vmatpush1.msra.mxu0 0.0
  %1444 = vmatprep.subr.mxu0 0.0
  %1445 = vmatpush1.msra.mxu0 0.0
  %1446 = vmatprep.subr.mxu0 0.0
  %1447 = vmatpush1.msra.mxu0 0.0
  %1448 = vmatprep.subr.mxu0 0.0
  %1449 = vmatpush1.msra.mxu0 0.0
  %1450 = vmatprep.subr.mxu0 0.0
  %1451 = vmatpush1.msra.mxu0 0.0
  %1452 = vmatprep.subr.mxu0 0.0
  %1453 = vmatpush1.msra.mxu0 0.0
  %1454 = vmatprep.mubr.f32.mxu0 0.0
  %1455 = vmatmul.mubr.f32.gmra.mrb[0].mxu0 %v1378
  %v1456 = vpop.f32.mrb[0].mxu0
  %v1457 = vadd.f32 0.0, %v1456
  %v1458 = vpop.f32.mrb[0].mxu0
  %v1459 = vadd.f32 0.0, %v1458
  %1460 = vdwg.mxu0
  %1461 = vmatprep.subr.mxu0 %v418
  %1462 = vmatpush1.msra.mxu0 %v417
  %1463 = vmatprep.subr.mxu0 %v422
  %1464 = vmatpush1.msra.mxu0 %v421
  %1465 = vmatprep.subr.mxu0 %v426
  %1466 = vmatpush1.msra.mxu0 %v425
  %1467 = vmatprep.subr.mxu0 %v430
  %1468 = vmatpush1.msra.mxu0 %v429
  %1469 = vmatprep.subr.mxu0 %v434
  %1470 = vmatpush1.msra.mxu0 %v433
  %1471 = vmatprep.subr.mxu0 %v438
  %1472 = vmatpush1.msra.mxu0 %v437
  %1473 = vmatprep.subr.mxu0 %v442
  %1474 = vmatpush1.msra.mxu0 %v441
  %1475 = vmatprep.subr.mxu0 %v446
  %1476 = vmatpush1.msra.mxu0 %v445
  %1477 = vmatprep.subr.mxu0 %v450
  %1478 = vmatpush1.msra.mxu0 %v449
  %1479 = vmatprep.subr.mxu0 %v454
  %1480 = vmatpush1.msra.mxu0 %v453
  %1481 = vmatprep.subr.mxu0 %v458
  %1482 = vmatpush1.msra.mxu0 %v457
  %1483 = vmatprep.subr.mxu0 %v462
  %1484 = vmatpush1.msra.mxu0 %v461
  %1485 = vmatprep.subr.mxu0 %v466
  %1486 = vmatpush1.msra.mxu0 %v465
  %1487 = vmatprep.subr.mxu0 %v470
  %1488 = vmatpush1.msra.mxu0 %v469
  %1489 = vmatprep.subr.mxu0 %v474
  %1490 = vmatpush1.msra.mxu0 %v473
  %1491 = vmatprep.subr.mxu0 %v478
  %1492 = vmatpush1.msra.mxu0 %v477
  %1493 = vmatprep.subr.mxu0 0.0
  %1494 = vmatpush1.msra.mxu0 0.0
  %1495 = vmatprep.subr.mxu0 0.0
  %1496 = vmatpush1.msra.mxu0 0.0
  %1497 = vmatprep.subr.mxu0 0.0
  %1498 = vmatpush1.msra.mxu0 0.0
  %1499 = vmatprep.subr.mxu0 0.0
  %1500 = vmatpush1.msra.mxu0 0.0
  %1501 = vmatprep.subr.mxu0 0.0
  %1502 = vmatpush1.msra.mxu0 0.0
  %1503 = vmatprep.subr.mxu0 0.0
  %1504 = vmatpush1.msra.mxu0 0.0
  %1505 = vmatprep.subr.mxu0 0.0
  %1506 = vmatpush1.msra.mxu0 0.0
  %1507 = vmatprep.subr.mxu0 0.0
  %1508 = vmatpush1.msra.mxu0 0.0
  %1509 = vmatprep.subr.mxu0 0.0
  %1510 = vmatpush1.msra.mxu0 0.0
  %1511 = vmatprep.subr.mxu0 0.0
  %1512 = vmatpush1.msra.mxu0 0.0
  %1513 = vmatprep.subr.mxu0 0.0
  %1514 = vmatpush1.msra.mxu0 0.0
  %1515 = vmatprep.subr.mxu0 0.0
  %1516 = vmatpush1.msra.mxu0 0.0
  %1517 = vmatprep.subr.mxu0 0.0
  %1518 = vmatpush1.msra.mxu0 0.0
  %1519 = vmatprep.subr.mxu0 0.0
  %1520 = vmatpush1.msra.mxu0 0.0
  %1521 = vmatprep.subr.mxu0 0.0
  %1522 = vmatpush1.msra.mxu0 0.0
  %1523 = vmatprep.subr.mxu0 0.0
  %1524 = vmatpush1.msra.mxu0 0.0
  %1525 = vmatprep.mubr.f32.mxu0 0.0
  %1526 = vmatmul.mubr.f32.gmra.mrb[0].mxu0 %v1378
  %v1527 = vpop.f32.mrb[0].mxu0
  %v1528 = vadd.f32 0.0, %v1527
  %v1529 = vpop.f32.mrb[0].mxu0
  %v1530 = vadd.f32 0.0, %v1529
  %1531 = vdwg.mxu0
  %v1532 = vadd.f32 %v1386, %v1457
  %v1533 = vadd.f32 %v1387, %v1459
  %v1534 = vadd.f32 %v1388, %v1528
  %v1535 = vadd.f32 %v1389, %v1530
  %v1536 = vxor.u32 %v1532, 2147483648
  %v1537 = vmul.f32 %v1536, 1.442695
  %v1538 = vpow.pop %v1537
  %v1539 = vadd.f32 %v1538, 1.0
  %v1540 = vrcp.pop %v1539
  %v1541 = vmul.f32 1.0, %v1540
  %v1542 = vxor.u32 %v1533, 2147483648
  %v1543 = vmul.f32 %v1542, 1.442695
  %v1544 = vpow.pop %v1543
  %v1545 = vadd.f32 %v1544, 1.0
  %v1546 = vrcp.pop %v1545
  %v1547 = vmul.f32 1.0, %v1546
  %v1548 = vtanh.pop %v1534
  %v1549 = vxor.u32 %v1535, 2147483648
  %v1550 = vmul.f32 %v1549, 1.442695
  %v1551 = vpow.pop %v1550
  %v1552 = vadd.f32 %v1551, 1.0
  %v1553 = vrcp.pop %v1552
  %v1554 = vmul.f32 1.0, %v1553
  %v1555 = vmul.f32 %v1547, %v1376
  %v1556 = vmul.f32 %v1541, %v1548
  %v1557 = vadd.f32 %v1555, %v1556
  %v1558 = vtanh.pop %v1557
  %v1559 = vmul.f32 %v1554, %v1558
  %vm1560 = vcmp.eq.s32.totalorder %v480, 5
  %v1561 = vsel %vm1560, 1, 0
  %1562 = vset.pattern.permute.xlu0 0
  %1563 = vperm.xlu0 %1562, %v1561
  %v1564 = vpop.permute.xlu0 %1563
  %vm1565 = vcmp.eq.s32.totalorder %v1564, 1
  %v1566 = vsel %vm1565, %v1559, %v1385
  %v1567 = vld [vmem:[%s401] sm:$0xff]
  %v1568 = vld [vmem:[%s401 + $0x8] sm:$0xff]
  %v1569 = vld [vmem:[%s401 + $0x10] sm:$0xff]
  %v1570 = vld [vmem:[%s401 + $0x18] sm:$0xff]
  %1571 = vmatprep.subr.mxu0 %v416
  %1572 = vmatpush1.msra.mxu0 %v415
  %1573 = vmatprep.subr.mxu0 %v420
  %1574 = vmatpush1.msra.mxu0 %v419
  %1575 = vmatprep.subr.mxu0 %v424
  %1576 = vmatpush1.msra.mxu0 %v423
  %1577 = vmatprep.subr.mxu0 %v428
  %1578 = vmatpush1.msra.mxu0 %v427
  %1579 = vmatprep.subr.mxu0 %v432
  %1580 = vmatpush1.msra.mxu0 %v431
  %1581 = vmatprep.subr.mxu0 %v436
  %1582 = vmatpush1.msra.mxu0 %v435
  %1583 = vmatprep.subr.mxu0 %v440
  %1584 = vmatpush1.msra.mxu0 %v439
  %1585 = vmatprep.subr.mxu0 %v444
  %1586 = vmatpush1.msra.mxu0 %v443
  %1587 = vmatprep.subr.mxu0 %v448
  %1588 = vmatpush1.msra.mxu0 %v447
  %1589 = vmatprep.subr.mxu0 %v452
  %1590 = vmatpush1.msra.mxu0 %v451
  %1591 = vmatprep.subr.mxu0 %v456
  %1592 = vmatpush1.msra.mxu0 %v455
  %1593 = vmatprep.subr.mxu0 %v460
  %1594 = vmatpush1.msra.mxu0 %v459
  %1595 = vmatprep.subr.mxu0 %v464
  %1596 = vmatpush1.msra.mxu0 %v463
  %1597 = vmatprep.subr.mxu0 %v468
  %1598 = vmatpush1.msra.mxu0 %v467
  %1599 = vmatprep.subr.mxu0 %v472
  %1600 = vmatpush1.msra.mxu0 %v471
  %1601 = vmatprep.subr.mxu0 %v476
  %1602 = vmatpush1.msra.mxu0 %v475
  %1603 = vmatprep.subr.mxu0 0.0
  %1604 = vmatpush1.msra.mxu0 0.0
  %1605 = vmatprep.subr.mxu0 0.0
  %1606 = vmatpush1.msra.mxu0 0.0
  %1607 = vmatprep.subr.mxu0 0.0
  %1608 = vmatpush1.msra.mxu0 0.0
  %1609 = vmatprep.subr.mxu0 0.0
  %1610 = vmatpush1.msra.mxu0 0.0
  %1611 = vmatprep.subr.mxu0 0.0
  %1612 = vmatpush1.msra.mxu0 0.0
  %1613 = vmatprep.subr.mxu0 0.0
  %1614 = vmatpush1.msra.mxu0 0.0
  %1615 = vmatprep.subr.mxu0 0.0
  %1616 = vmatpush1.msra.mxu0 0.0
  %1617 = vmatprep.subr.mxu0 0.0
  %1618 = vmatpush1.msra.mxu0 0.0
  %1619 = vmatprep.subr.mxu0 0.0
  %1620 = vmatpush1.msra.mxu0 0.0
  %1621 = vmatprep.subr.mxu0 0.0
  %1622 = vmatpush1.msra.mxu0 0.0
  %1623 = vmatprep.subr.mxu0 0.0
  %1624 = vmatpush1.msra.mxu0 0.0
  %1625 = vmatprep.subr.mxu0 0.0
  %1626 = vmatpush1.msra.mxu0 0.0
  %1627 = vmatprep.subr.mxu0 0.0
  %1628 = vmatpush1.msra.mxu0 0.0
  %1629 = vmatprep.subr.mxu0 0.0
  %1630 = vmatpush1.msra.mxu0 0.0
  %1631 = vmatprep.subr.mxu0 0.0
  %1632 = vmatpush1.msra.mxu0 0.0
  %1633 = vmatprep.subr.mxu0 0.0
  %1634 = vmatpush1.msra.mxu0 0.0
  %1635 = vmatprep.mubr.f32.mxu0 0.0
  %1636 = vmatmul.mubr.f32.gmra.mrb[0].mxu0 %v1559
  %v1637 = vpop.f32.mrb[0].mxu0
  %v1638 = vadd.f32 0.0, %v1637
  %v1639 = vpop.f32.mrb[0].mxu0
  %v1640 = vadd.f32 0.0, %v1639
  %1641 = vdwg.mxu0
  %1642 = vmatprep.subr.mxu0 %v418
  %1643 = vmatpush1.msra.mxu0 %v417
  %1644 = vmatprep.subr.mxu0 %v422
  %1645 = vmatpush1.msra.mxu0 %v421
  %1646 = vmatprep.subr.mxu0 %v426
  %1647 = vmatpush1.msra.mxu0 %v425
  %1648 = vmatprep.subr.mxu0 %v430
  %1649 = vmatpush1.msra.mxu0 %v429
  %1650 = vmatprep.subr.mxu0 %v434
  %1651 = vmatpush1.msra.mxu0 %v433
  %1652 = vmatprep.subr.mxu0 %v438
  %1653 = vmatpush1.msra.mxu0 %v437
  %1654 = vmatprep.subr.mxu0 %v442
  %1655 = vmatpush1.msra.mxu0 %v441
  %1656 = vmatprep.subr.mxu0 %v446
  %1657 = vmatpush1.msra.mxu0 %v445
  %1658 = vmatprep.subr.mxu0 %v450
  %1659 = vmatpush1.msra.mxu0 %v449
  %1660 = vmatprep.subr.mxu0 %v454
  %1661 = vmatpush1.msra.mxu0 %v453
  %1662 = vmatprep.subr.mxu0 %v458
  %1663 = vmatpush1.msra.mxu0 %v457
  %1664 = vmatprep.subr.mxu0 %v462
  %1665 = vmatpush1.msra.mxu0 %v461
  %1666 = vmatprep.subr.mxu0 %v466
  %1667 = vmatpush1.msra.mxu0 %v465
  %1668 = vmatprep.subr.mxu0 %v470
  %1669 = vmatpush1.msra.mxu0 %v469
  %1670 = vmatprep.subr.mxu0 %v474
  %1671 = vmatpush1.msra.mxu0 %v473
  %1672 = vmatprep.subr.mxu0 %v478
  %1673 = vmatpush1.msra.mxu0 %v477
  %1674 = vmatprep.subr.mxu0 0.0
  %1675 = vmatpush1.msra.mxu0 0.0
  %1676 = vmatprep.subr.mxu0 0.0
  %1677 = vmatpush1.msra.mxu0 0.0
  %1678 = vmatprep.subr.mxu0 0.0
  %1679 = vmatpush1.msra.mxu0 0.0
  %1680 = vmatprep.subr.mxu0 0.0
  %1681 = vmatpush1.msra.mxu0 0.0
  %1682 = vmatprep.subr.mxu0 0.0
  %1683 = vmatpush1.msra.mxu0 0.0
  %1684 = vmatprep.subr.mxu0 0.0
  %1685 = vmatpush1.msra.mxu0 0.0
  %1686 = vmatprep.subr.mxu0 0.0
  %1687 = vmatpush1.msra.mxu0 0.0
  %1688 = vmatprep.subr.mxu0 0.0
  %1689 = vmatpush1.msra.mxu0 0.0
  %1690 = vmatprep.subr.mxu0 0.0
  %1691 = vmatpush1.msra.mxu0 0.0
  %1692 = vmatprep.subr.mxu0 0.0
  %1693 = vmatpush1.msra.mxu0 0.0
  %1694 = vmatprep.subr.mxu0 0.0
  %1695 = vmatpush1.msra.mxu0 0.0
  %1696 = vmatprep.subr.mxu0 0.0
  %1697 = vmatpush1.msra.mxu0 0.0
  %1698 = vmatprep.subr.mxu0 0.0
  %1699 = vmatpush1.msra.mxu0 0.0
  %1700 = vmatprep.subr.mxu0 0.0
  %1701 = vmatpush1.msra.mxu0 0.0
  %1702 = vmatprep.subr.mxu0 0.0
  %1703 = vmatpush1.msra.mxu0 0.0
  %1704 = vmatprep.subr.mxu0 0.0
  %1705 = vmatpush1.msra.mxu0 0.0
  %1706 = vmatprep.mubr.f32.mxu0 0.0
  %1707 = vmatmul.mubr.f32.gmra.mrb[0].mxu0 %v1559
  %v1708 = vpop.f32.mrb[0].mxu0
  %v1709 = vadd.f32 0.0, %v1708
  %v1710 = vpop.f32.mrb[0].mxu0
  %v1711 = vadd.f32 0.0, %v1710
  %1712 = vdwg.mxu0
  %v1713 = vadd.f32 %v1567, %v1638
  %v1714 = vadd.f32 %v1568, %v1640
  %v1715 = vadd.f32 %v1569, %v1709
  %v1716 = vadd.f32 %v1570, %v1711
  %v1717 = vxor.u32 %v1713, 2147483648
  %v1718 = vmul.f32 %v1717, 1.442695
  %v1719 = vpow.pop %v1718
  %v1720 = vadd.f32 %v1719, 1.0
  %v1721 = vrcp.pop %v1720
  %v1722 = vmul.f32 1.0, %v1721
  %v1723 = vxor.u32 %v1714, 2147483648
  %v1724 = vmul.f32 %v1723, 1.442695
  %v1725 = vpow.pop %v1724
  %v1726 = vadd.f32 %v1725, 1.0
  %v1727 = vrcp.pop %v1726
  %v1728 = vmul.f32 1.0, %v1727
  %v1729 = vtanh.pop %v1715
  %v1730 = vxor.u32 %v1716, 2147483648
  %v1731 = vmul.f32 %v1730, 1.442695
  %v1732 = vpow.pop %v1731
  %v1733 = vadd.f32 %v1732, 1.0
  %v1734 = vrcp.pop %v1733
  %v1735 = vmul.f32 1.0, %v1734
  %v1736 = vmul.f32 %v1728, %v1557
  %v1737 = vmul.f32 %v1722, %v1729
  %v1738 = vadd.f32 %v1736, %v1737
  %v1739 = vtanh.pop %v1738
  %v1740 = vmul.f32 %v1735, %v1739
  %vm1741 = vcmp.eq.s32.totalorder %v480, 6
  %v1742 = vsel %vm1741, 1, 0
  %1743 = vset.pattern.permute.xlu0 0
  %1744 = vperm.xlu0 %1743, %v1742
  %v1745 = vpop.permute.xlu0 %1744
  %vm1746 = vcmp.eq.s32.totalorder %v1745, 1
  %v1747 = vsel %vm1746, %v1740, %v1566
  %v1748 = vld [vmem:[%s406] sm:$0xff]
  %v1749 = vld [vmem:[%s406 + $0x8] sm:$0xff]
  %v1750 = vld [vmem:[%s406 + $0x10] sm:$0xff]
  %v1751 = vld [vmem:[%s406 + $0x18] sm:$0xff]
  %1752 = vmatprep.subr.mxu0 %v416
  %1753 = vmatpush1.msra.mxu0 %v415
  %1754 = vmatprep.subr.mxu0 %v420
  %1755 = vmatpush1.msra.mxu0 %v419
  %1756 = vmatprep.subr.mxu0 %v424
  %1757 = vmatpush1.msra.mxu0 %v423
  %1758 = vmatprep.subr.mxu0 %v428
  %1759 = vmatpush1.msra.mxu0 %v427
  %1760 = vmatprep.subr.mxu0 %v432
  %1761 = vmatpush1.msra.mxu0 %v431
  %1762 = vmatprep.subr.mxu0 %v436
  %1763 = vmatpush1.msra.mxu0 %v435
  %1764 = vmatprep.subr.mxu0 %v440
  %1765 = vmatpush1.msra.mxu0 %v439
  %1766 = vmatprep.subr.mxu0 %v444
  %1767 = vmatpush1.msra.mxu0 %v443
  %1768 = vmatprep.subr.mxu0 %v448
  %1769 = vmatpush1.msra.mxu0 %v447
  %1770 = vmatprep.subr.mxu0 %v452
  %1771 = vmatpush1.msra.mxu0 %v451
  %1772 = vmatprep.subr.mxu0 %v456
  %1773 = vmatpush1.msra.mxu0 %v455
  %1774 = vmatprep.subr.mxu0 %v460
  %1775 = vmatpush1.msra.mxu0 %v459
  %1776 = vmatprep.subr.mxu0 %v464
  %1777 = vmatpush1.msra.mxu0 %v463
  %1778 = vmatprep.subr.mxu0 %v468
  %1779 = vmatpush1.msra.mxu0 %v467
  %1780 = vmatprep.subr.mxu0 %v472
  %1781 = vmatpush1.msra.mxu0 %v471
  %1782 = vmatprep.subr.mxu0 %v476
  %1783 = vmatpush1.msra.mxu0 %v475
  %1784 = vmatprep.subr.mxu0 0.0
  %1785 = vmatpush1.msra.mxu0 0.0
  %1786 = vmatprep.subr.mxu0 0.0
  %1787 = vmatpush1.msra.mxu0 0.0
  %1788 = vmatprep.subr.mxu0 0.0
  %1789 = vmatpush1.msra.mxu0 0.0
  %1790 = vmatprep.subr.mxu0 0.0
  %1791 = vmatpush1.msra.mxu0 0.0
  %1792 = vmatprep.subr.mxu0 0.0
  %1793 = vmatpush1.msra.mxu0 0.0
  %1794 = vmatprep.subr.mxu0 0.0
  %1795 = vmatpush1.msra.mxu0 0.0
  %1796 = vmatprep.subr.mxu0 0.0
  %1797 = vmatpush1.msra.mxu0 0.0
  %1798 = vmatprep.subr.mxu0 0.0
  %1799 = vmatpush1.msra.mxu0 0.0
  %1800 = vmatprep.subr.mxu0 0.0
  %1801 = vmatpush1.msra.mxu0 0.0
  %1802 = vmatprep.subr.mxu0 0.0
  %1803 = vmatpush1.msra.mxu0 0.0
  %1804 = vmatprep.subr.mxu0 0.0
  %1805 = vmatpush1.msra.mxu0 0.0
  %1806 = vmatprep.subr.mxu0 0.0
  %1807 = vmatpush1.msra.mxu0 0.0
  %1808 = vmatprep.subr.mxu0 0.0
  %1809 = vmatpush1.msra.mxu0 0.0
  %1810 = vmatprep.subr.mxu0 0.0
  %1811 = vmatpush1.msra.mxu0 0.0
  %1812 = vmatprep.subr.mxu0 0.0
  %1813 = vmatpush1.msra.mxu0 0.0
  %1814 = vmatprep.subr.mxu0 0.0
  %1815 = vmatpush1.msra.mxu0 0.0
  %1816 = vmatprep.mubr.f32.mxu0 0.0
  %1817 = vmatmul.mubr.f32.gmra.mrb[0].mxu0 %v1740
  %v1818 = vpop.f32.mrb[0].mxu0
  %v1819 = vadd.f32 0.0, %v1818
  %v1820 = vpop.f32.mrb[0].mxu0
  %v1821 = vadd.f32 0.0, %v1820
  %1822 = vdwg.mxu0
  %1823 = vmatprep.subr.mxu0 %v418
  %1824 = vmatpush1.msra.mxu0 %v417
  %1825 = vmatprep.subr.mxu0 %v422
  %1826 = vmatpush1.msra.mxu0 %v421
  %1827 = vmatprep.subr.mxu0 %v426
  %1828 = vmatpush1.msra.mxu0 %v425
  %1829 = vmatprep.subr.mxu0 %v430
  %1830 = vmatpush1.msra.mxu0 %v429
  %1831 = vmatprep.subr.mxu0 %v434
  %1832 = vmatpush1.msra.mxu0 %v433
  %1833 = vmatprep.subr.mxu0 %v438
  %1834 = vmatpush1.msra.mxu0 %v437
  %1835 = vmatprep.subr.mxu0 %v442
  %1836 = vmatpush1.msra.mxu0 %v441
  %1837 = vmatprep.subr.mxu0 %v446
  %1838 = vmatpush1.msra.mxu0 %v445
  %1839 = vmatprep.subr.mxu0 %v450
  %1840 = vmatpush1.msra.mxu0 %v449
  %1841 = vmatprep.subr.mxu0 %v454
  %1842 = vmatpush1.msra.mxu0 %v453
  %1843 = vmatprep.subr.mxu0 %v458
  %1844 = vmatpush1.msra.mxu0 %v457
  %1845 = vmatprep.subr.mxu0 %v462
  %1846 = vmatpush1.msra.mxu0 %v461
  %1847 = vmatprep.subr.mxu0 %v466
  %1848 = vmatpush1.msra.mxu0 %v465
  %1849 = vmatprep.subr.mxu0 %v470
  %1850 = vmatpush1.msra.mxu0 %v469
  %1851 = vmatprep.subr.mxu0 %v474
  %1852 = vmatpush1.msra.mxu0 %v473
  %1853 = vmatprep.subr.mxu0 %v478
  %1854 = vmatpush1.msra.mxu0 %v477
  %1855 = vmatprep.subr.mxu0 0.0
  %1856 = vmatpush1.msra.mxu0 0.0
  %1857 = vmatprep.subr.mxu0 0.0
  %1858 = vmatpush1.msra.mxu0 0.0
  %1859 = vmatprep.subr.mxu0 0.0
  %1860 = vmatpush1.msra.mxu0 0.0
  %1861 = vmatprep.subr.mxu0 0.0
  %1862 = vmatpush1.msra.mxu0 0.0
  %1863 = vmatprep.subr.mxu0 0.0
  %1864 = vmatpush1.msra.mxu0 0.0
  %1865 = vmatprep.subr.mxu0 0.0
  %1866 = vmatpush1.msra.mxu0 0.0
  %1867 = vmatprep.subr.mxu0 0.0
  %1868 = vmatpush1.msra.mxu0 0.0
  %1869 = vmatprep.subr.mxu0 0.0
  %1870 = vmatpush1.msra.mxu0 0.0
  %1871 = vmatprep.subr.mxu0 0.0
  %1872 = vmatpush1.msra.mxu0 0.0
  %1873 = vmatprep.subr.mxu0 0.0
  %1874 = vmatpush1.msra.mxu0 0.0
  %1875 = vmatprep.subr.mxu0 0.0
  %1876 = vmatpush1.msra.mxu0 0.0
  %1877 = vmatprep.subr.mxu0 0.0
  %1878 = vmatpush1.msra.mxu0 0.0
  %1879 = vmatprep.subr.mxu0 0.0
  %1880 = vmatpush1.msra.mxu0 0.0
  %1881 = vmatprep.subr.mxu0 0.0
  %1882 = vmatpush1.msra.mxu0 0.0
  %1883 = vmatprep.subr.mxu0 0.0
  %1884 = vmatpush1.msra.mxu0 0.0
  %1885 = vmatprep.subr.mxu0 0.0
  %1886 = vmatpush1.msra.mxu0 0.0
  %1887 = vmatprep.mubr.f32.mxu0 0.0
  %1888 = vmatmul.mubr.f32.gmra.mrb[0].mxu0 %v1740
  %v1889 = vpop.f32.mrb[0].mxu0
  %v1890 = vadd.f32 0.0, %v1889
  %v1891 = vpop.f32.mrb[0].mxu0
  %v1892 = vadd.f32 0.0, %v1891
  %1893 = vdwg.mxu0
  %v1894 = vadd.f32 %v1748, %v1819
  %v1895 = vadd.f32 %v1749, %v1821
  %v1896 = vadd.f32 %v1750, %v1890
  %v1897 = vadd.f32 %v1751, %v1892
  %v1898 = vxor.u32 %v1894, 2147483648
  %v1899 = vmul.f32 %v1898, 1.442695
  %v1900 = vpow.pop %v1899
  %v1901 = vadd.f32 %v1900, 1.0
  %v1902 = vrcp.pop %v1901
  %v1903 = vmul.f32 1.0, %v1902
  %v1904 = vxor.u32 %v1895, 2147483648
  %v1905 = vmul.f32 %v1904, 1.442695
  %v1906 = vpow.pop %v1905
  %v1907 = vadd.f32 %v1906, 1.0
  %v1908 = vrcp.pop %v1907
  %v1909 = vmul.f32 1.0, %v1908
  %v1910 = vtanh.pop %v1896
  %v1911 = vxor.u32 %v1897, 2147483648
  %v1912 = vmul.f32 %v1911, 1.442695
  %v1913 = vpow.pop %v1912
  %v1914 = vadd.f32 %v1913, 1.0
  %v1915 = vrcp.pop %v1914
  %v1916 = vmul.f32 1.0, %v1915
  %v1917 = vmul.f32 %v1909, %v1738
  %v1918 = vmul.f32 %v1903, %v1910
  %v1919 = vadd.f32 %v1917, %v1918
  %v1920 = vtanh.pop %v1919
  %v1921 = vmul.f32 %v1916, %v1920
  %vm1922 = vcmp.eq.s32.totalorder %v480, 7
  %v1923 = vsel %vm1922, 1, 0
  %1924 = vset.pattern.permute.xlu0 0
  %1925 = vperm.xlu0 %1924, %v1923
  %v1926 = vpop.permute.xlu0 %1925
  %vm1927 = vcmp.eq.s32.totalorder %v1926, 1
  %v1928 = vsel %vm1927, %v1921, %v1747
  %v1929 = vld [vmem:[%s5] sm:$0x1]
  %v1931 = vlaneseq
  %v1932 = vshrl.u32 %v1931, 7
  %v1933 = vsub.s32 0, %v1932
  %v1934 = vrot.slane %v1929, %v1933
  %v1936 = vmul.f32 %v1928, %v1934
  %1937 = vadd.xlane.f32.xlu0 %v1936
  %v1938 = vpop.xlane.xlu0 %1937
  %v1939 = vld [vmem:[#allocation5] sm:$0x1]
  %v1941 = vlaneseq
  %v1942 = vshrl.u32 %v1941, 7
  %v1943 = vsub.s32 0, %v1942
  %v1944 = vrot.slane %v1939, %v1943
  %v1946 = vadd.f32 %v1938, %v1944
  %vm1947 = vcmask 7168
  %1948 = vst.msk [vmem:[%s7] sm:$0xff] %vm1947, %v1946
  // Predicated region
  $region30: #{critic_forward.1} parent=0 // pred_check
    _
  $region31: #{critic_forward.1} parent=0 // pred_check_branch
    %1950 = sbr.rel (0) target = $region33
  $region32: #{critic_forward.1} parent=0 // pred_region
    _
  $region33: #{critic_forward.1} parent=0 // pred_fallthru
    _
  // Predicated region
  $region34: #{critic_forward.1} parent=0 // pred_check
    _
  $region35: #{critic_forward.1} parent=0 // pred_check_branch
    %1952 = sbr.rel (0) target = $region37
  $region36: #{critic_forward.1} parent=0 // pred_region
    _
  $region37: #{critic_forward.1} parent=0 // pred_fallthru
    _
  %1953 = vsyncmov [#allocation4]
  %s1954 = vpop.sfrf %1953
  %p1955 = scmp.eq.s32.totalorder %s1954, 0
  %p1956 = pneg %p1955
  %1958 = shalt.err (%p1956)

</llo_original>
